<compile_context>
chip_gen: v7x
topology: tpu7x:2x2x1
jax: 0.10.0
libtpu: 0.0.40
codegen_flags: <defaults>
</compile_context>

<pallas_src>
import functools

import jax
import jax.numpy as jnp
from jax.experimental import pallas as pl
from jax.experimental.pallas import tpu as pltpu


# ---------------------------------------------------------------------------
# Generation-aware tile sizing
# ---------------------------------------------------------------------------
def _tile_params():
    """Return (target x-block bytes, scoped VMEM limit bytes) per TPU gen."""
    try:
        phys_vmem = int(pltpu.get_tpu_info().vmem_capacity_bytes)
    except Exception:
        phys_vmem = None
    if phys_vmem is not None and phys_vmem <= (64 << 20):
        # v7x-class: 64 MiB physical VMEM, ~3.2 TB/s HBM per TC.
        # Bigger blocks to hide the ~0.35 us/step overhead, but keep
        # 2x block + scratch well under the 64 MiB physical ceiling.
        return 12 << 20, 48 << 20
    # v5e / v6e: 128 MiB physical VMEM. 8 MiB blocks, double-buffered,
    # fit comfortably under an explicit 32 MiB scoped limit (the v5e
    # default scoped limit is only 16 MiB, so set it explicitly).
    return 8 << 20, 32 << 20


def _pick_hw_tile(hw, c, itemsize, target_bytes):
    """Largest lane-aligned spatial tile with a (C, thw) block <= target_bytes.

    Prefers an exact divisor of hw (no tail mask) unless that divisor is much
    smaller than the budget; otherwise returns the budget-sized 128-multiple
    and the caller uses a cdiv grid with a masked tail tile."""
    max_lanes = max(128, ((target_bytes // (itemsize * c)) // 128) * 128)
    if hw <= max_lanes:
        return hw
    t = max_lanes
    while t >= max(128, max_lanes // 2):
        if hw % t == 0:
            return t
        t -= 128
    return max_lanes  # no good divisor -> masked tail tile


def _pick_batch_tile(b, per_sample_bytes, target_bytes):
    """Largest batch tile with a (TB, C, HW) block <= target_bytes."""
    max_tb = max(1, min(b, target_bytes // max(1, per_sample_bytes)))
    if max_tb >= b:
        return b
    t = max_tb
    while t >= max(1, max_tb // 2):
        if b % t == 0:
            return t
        t -= 1
    return max_tb  # non-divisor: cdiv grid, partial last block (rows discarded)


# ---------------------------------------------------------------------------
# Regime A: spatial-tiled streaming reduction + fused MLP finalize
# ---------------------------------------------------------------------------
def _ca_spatial_kernel(x_ref, w1_ref, w2_ref, o_ref, sum_acc, max_acc,
                       *, hw_total, thw, needs_mask):
    s = pl.program_id(1)  # spatial-tile (reduction) index

    @pl.when(s == 0)
    def _init():
        sum_acc[...] = jnp.zeros_like(sum_acc)
        max_acc[...] = jnp.full_like(max_acc, -jnp.inf)

    xb = x_ref[0].astype(jnp.float32)                      # (C, thw), f32 accum
    if needs_mask:
        # Tail tile of a cdiv grid: Pallas does NOT zero-fill OOB block reads,
        # so mask padding lanes (0 for the sum, -inf for the max).
        lane = jax.lax.broadcasted_iota(jnp.int32, xb.shape, 1)
        remaining = hw_total - s * thw
        valid = lane < remaining
        xs = jnp.where(valid, xb, 0.0)
        xm = jnp.where(valid, xb, -jnp.inf)
    else:
        xs = xb
        xm = xb
    sum_acc[...] += jnp.sum(xs, axis=-1, keepdims=True)    # (C, 1)
    max_acc[...] = jnp.maximum(max_acc[...],
                               jnp.max(xm, axis=-1, keepdims=True))

    @pl.when(s == pl.num_programs(1) - 1)
    def _finalize():
        avg = sum_acc[...] * (1.0 / float(hw_total))       # (C, 1)
        mx = max_acc[...]                                  # (C, 1)
        pooled = jnp.concatenate([avg, mx], axis=-1)       # (C, 2): one W1 matmul
        hp = jax.lax.Precision.HIGHEST
        h2 = jnp.maximum(
            jnp.dot(w1_ref[...], pooled,
                    preferred_element_type=jnp.float32, precision=hp), 0.0)  # (Cr, 2)
        h = jnp.sum(h2, axis=-1, keepdims=True)            # relu(W1 avg)+relu(W1 max)
        # W2 is linear: fc(avg)+fc(max) == W2 @ h
        logits = jnp.dot(w2_ref[...], h,
                         preferred_element_type=jnp.float32, precision=hp)   # (C, 1)
        att = 1.0 / (1.0 + jnp.exp(-logits))               # sigmoid (EUP exp)
        o_ref[...] = att.reshape(o_ref.shape).astype(o_ref.dtype)


# ---------------------------------------------------------------------------
# Regime B: batch-blocked (small feature maps) -- whole H*W per block
# ---------------------------------------------------------------------------
def _ca_batched_kernel(x_ref, w1t_ref, w2t_ref, o_ref, *, hw_total):
    xb = x_ref[...].astype(jnp.float32)                    # (TB, C, HW), f32 accum
    avg = jnp.sum(xb, axis=-1) * (1.0 / float(hw_total))   # (TB, C)
    mx = jnp.max(xb, axis=-1)                              # (TB, C)
    hp = jax.lax.Precision.HIGHEST
    w1t = w1t_ref[...]                                     # (C, Cr)
    w2t = w2t_ref[...]                                     # (Cr, C)
    h = (jnp.maximum(jnp.dot(avg, w1t, preferred_element_type=jnp.float32,
                             precision=hp), 0.0)
         + jnp.maximum(jnp.dot(mx, w1t, preferred_element_type=jnp.float32,
                               precision=hp), 0.0))        # (TB, Cr)
    logits = jnp.dot(h, w2t, preferred_element_type=jnp.float32,
                     precision=hp)                         # (TB, C)
    att = 1.0 / (1.0 + jnp.exp(-logits))
    o_ref[...] = att[:, :, None].astype(o_ref.dtype)       # (TB, C, 1)


# ---------------------------------------------------------------------------
# Wrapper
# ---------------------------------------------------------------------------
def channel_attention(x_nchw, w1, w2, *, target_block_bytes=None,
                      vmem_limit_bytes=None):
    """x_nchw: (B, C, H, W); w1: (C//r, C); w2: (C, C//r) (PyTorch 1x1-conv
    weights with the trailing 1x1 squeezed).  Returns (B, C, 1, 1) sigmoid
    attention, matching ChannelAttention.forward."""
    B, C, H, W = x_nchw.shape
    Cr = w1.shape[0]
    HW = H * W
    itemsize = jnp.dtype(x_nchw.dtype).itemsize

    auto_target, auto_limit = _tile_params()
    target = target_block_bytes or auto_target
    limit = vmem_limit_bytes or auto_limit

    x = x_nchw.reshape(B, C, HW)        # free reshape: spatial axis -> lanes
    per_sample = C * HW * itemsize

    if per_sample <= target:
        # ---- Regime B: small feature map -> block the batch axis ----
        tb = _pick_batch_tile(B, per_sample, target)
        n_b = pl.cdiv(B, tb)
        kernel = functools.partial(_ca_batched_kernel, hw_total=HW)
        out = pl.pallas_call(
            kernel,
            out_shape=jax.ShapeDtypeStruct((B, C, 1), x_nchw.dtype),
            grid_spec=pltpu.PrefetchScalarGridSpec(
                num_scalar_prefetch=0,
                grid=(n_b,),
                in_specs=[
                    pl.BlockSpec((tb, C, HW), lambda b: (b, 0, 0)),
                    pl.BlockSpec((C, Cr), lambda b: (0, 0)),   # W1^T
                    pl.BlockSpec((Cr, C), lambda b: (0, 0)),   # W2^T
                ],
                out_specs=pl.BlockSpec((tb, C, 1), lambda b: (b, 0, 0)),
            ),
            compiler_params=pltpu.CompilerParams(
                dimension_semantics=("parallel",),
                vmem_limit_bytes=limit),
        )(x, jnp.transpose(w1), jnp.transpose(w2))
    else:
        # ---- Regime A: large feature map -> stream the spatial axis ----
        thw = _pick_hw_tile(HW, C, itemsize, target)
        n_hw = pl.cdiv(HW, thw)
        needs_mask = (HW % thw) != 0
        kernel = functools.partial(_ca_spatial_kernel, hw_total=HW, thw=thw,
                                   needs_mask=needs_mask)
        out = pl.pallas_call(
            kernel,
            out_shape=jax.ShapeDtypeStruct((B, C, 1), x_nchw.dtype),
            grid_spec=pltpu.PrefetchScalarGridSpec(
                num_scalar_prefetch=0,
                grid=(B, n_hw),
                in_specs=[
                    pl.BlockSpec((1, C, thw), lambda b, s: (b, 0, s)),
                    pl.BlockSpec((Cr, C), lambda b, s: (0, 0)),
                    pl.BlockSpec((C, Cr), lambda b, s: (0, 0)),
                ],
                out_specs=pl.BlockSpec((1, C, 1), lambda b, s: (b, 0, 0)),
                scratch_shapes=[pltpu.VMEM((C, 1), jnp.float32),   # running sum
                                pltpu.VMEM((C, 1), jnp.float32)],  # running max
            ),
            compiler_params=pltpu.CompilerParams(
                dimension_semantics=("parallel", "arbitrary"),
                vmem_limit_bytes=limit),
        )(x, w1, w2)
    return out.reshape(B, C, 1, 1)


# ---------------------------------------------------------------------------
# Pure-JAX reference (exact PyTorch math: fc(avg) + fc(max), then sigmoid)
# ---------------------------------------------------------------------------
def channel_attention_ref(x_nchw, w1, w2):
    avg = jnp.mean(x_nchw, axis=(2, 3))                    # (B, C)
    mx = jnp.max(x_nchw, axis=(2, 3))                      # (B, C)
    hp = jax.lax.Precision.HIGHEST

    def fc(v):
        h = jnp.maximum(jnp.einsum("rc,bc->br", w1, v, precision=hp), 0.0)
        return jnp.einsum("cr,br->bc", w2, h, precision=hp)

    return jax.nn.sigmoid(fc(avg) + fc(mx))[:, :, None, None]


if __name__ == "__main__":
    key = jax.random.PRNGKey(0)
    kx, k1, k2, kx2 = jax.random.split(key, 4)

    B, C, H, W = 2, 64, 16, 16
    reduction_ratio = 16
    Cr = C // reduction_ratio

    x = jax.random.normal(kx, (B, C, H, W), dtype=jnp.float32)       # NCHW
    # PyTorch Conv2d(C, Cr, 1, bias=False).weight is (Cr, C, 1, 1) -> squeezed.
    w1 = 0.2 * jax.random.normal(k1, (Cr, C), dtype=jnp.float32)
    w2 = 0.2 * jax.random.normal(k2, (C, Cr), dtype=jnp.float32)

    # --- Regime B (small feature map: batch-blocked, whole-HW blocks) ---
    out = jax.block_until_ready(channel_attention(x, w1, w2))
    ref = channel_attention_ref(x, w1, w2)
    assert out.shape == (B, C, 1, 1), out.shape
    assert jnp.allclose(out, ref, atol=1e-4, rtol=1e-4), (
        "regime-B mismatch, max abs err = "
        + str(float(jnp.max(jnp.abs(out - ref)))))

    # --- Regime A (spatial streaming) with a masked non-divisor tail tile,
    #     forced via a tiny per-block budget (H*W = 400 has no 128-divisor) ---
    H2, W2 = 20, 20
    x2 = jax.random.normal(kx2, (B, C, H2, W2), dtype=jnp.float32)
    out2 = jax.block_until_ready(
        channel_attention(x2, w1, w2, target_block_bytes=128 * C * 4))
    ref2 = channel_attention_ref(x2, w1, w2)
    assert out2.shape == (B, C, 1, 1), out2.shape
    assert jnp.allclose(out2, ref2, atol=1e-4, rtol=1e-4), (
        "regime-A mismatch, max abs err = "
        + str(float(jnp.max(jnp.abs(out2 - ref2)))))

    print("KERNEL_OK")
</pallas_src>

<mosaic_0001>
module attributes {stable_mosaic.version = 11 : i64} {
  func.func @_ca_batched_kernel(%arg0: i32, %arg1: memref<2x64x256xf32, #tpu.memory_space<vmem>>, %arg2: memref<64x4xf32, #tpu.memory_space<vmem>>, %arg3: memref<4x64xf32, #tpu.memory_space<vmem>>, %arg4: memref<2x64x1xf32, #tpu.memory_space<vmem>>) attributes {dimension_semantics = [#tpu.dimension_semantics<parallel>], iteration_bounds = array<i64: 1>, scalar_prefetch = 0 : i64, scratch_operands = 0 : i64, tpu.core_type = #tpu.core_type<tc>, window_params = [{transform_indices = @transform_0, window_bounds = array<i64: 2, 64, 256>}, {pipeline_mode = #tpu.pipeline_mode<synchronous>, transform_indices = @transform_1, window_bounds = array<i64: 64, 4>}, {pipeline_mode = #tpu.pipeline_mode<synchronous>, transform_indices = @transform_2, window_bounds = array<i64: 4, 64>}, {transform_indices = @transform_3, window_bounds = array<i64: 2, 64, 1>}]} {
    %c0 = arith.constant 0 : index
    %c0_0 = arith.constant 0 : index
    %c0_1 = arith.constant 0 : index
    %0 = vector.load %arg1[%c0, %c0_0, %c0_1] : memref<2x64x256xf32, #tpu.memory_space<vmem>>, vector<2x64x256xf32>
    %cst = arith.constant dense<0.000000e+00> : vector<2x64xf32>
    %1 = vector.multi_reduction <add>, %0, %cst [2] : vector<2x64x256xf32> to vector<2x64xf32>
    %cst_2 = arith.constant 3.906250e-03 : f32
    %2 = vector.broadcast %cst_2 : f32 to vector<2x64xf32>
    %3 = arith.mulf %1, %2 : vector<2x64xf32>
    %cst_3 = arith.constant dense<0xFF800000> : vector<2x64xf32>
    %4 = vector.multi_reduction <maximumf>, %0, %cst_3 [2] : vector<2x64x256xf32> to vector<2x64xf32>
    %c0_4 = arith.constant 0 : index
    %c0_5 = arith.constant 0 : index
    %5 = vector.load %arg2[%c0_4, %c0_5] : memref<64x4xf32, #tpu.memory_space<vmem>>, vector<64x4xf32>
    %c0_6 = arith.constant 0 : index
    %c0_7 = arith.constant 0 : index
    %6 = vector.load %arg3[%c0_6, %c0_7] : memref<4x64xf32, #tpu.memory_space<vmem>>, vector<4x64xf32>
    %cst_8 = arith.constant dense<0.000000e+00> : vector<2x4xf32>
    %7 = tpu.matmul %3, %5, %cst_8 {dimension_numbers = #tpu.dot_dimension_numbers<[1], [0], [0], [1], [0, 0, 1, 1], [], []>, precision = #tpu.contract_precision<fp32>} : vector<2x64xf32>, vector<64x4xf32>, vector<2x4xf32> -> vector<2x4xf32>
    %cst_9 = arith.constant 0.000000e+00 : f32
    %8 = vector.broadcast %cst_9 : f32 to vector<2x4xf32>
    %9 = arith.maximumf %7, %8 : vector<2x4xf32>
    %cst_10 = arith.constant dense<0.000000e+00> : vector<2x4xf32>
    %10 = tpu.matmul %4, %5, %cst_10 {dimension_numbers = #tpu.dot_dimension_numbers<[1], [0], [0], [1], [0, 0, 1, 1], [], []>, precision = #tpu.contract_precision<fp32>} : vector<2x64xf32>, vector<64x4xf32>, vector<2x4xf32> -> vector<2x4xf32>
    %cst_11 = arith.constant 0.000000e+00 : f32
    %11 = vector.broadcast %cst_11 : f32 to vector<2x4xf32>
    %12 = arith.maximumf %10, %11 : vector<2x4xf32>
    %13 = arith.addf %9, %12 : vector<2x4xf32>
    %cst_12 = arith.constant dense<0.000000e+00> : vector<2x64xf32>
    %14 = tpu.matmul %13, %6, %cst_12 {dimension_numbers = #tpu.dot_dimension_numbers<[1], [0], [0], [1], [0, 0, 1, 1], [], []>, precision = #tpu.contract_precision<fp32>} : vector<2x4xf32>, vector<4x64xf32>, vector<2x64xf32> -> vector<2x64xf32>
    %cst_13 = arith.constant 0.000000e+00 : f32
    %15 = vector.broadcast %cst_13 : f32 to vector<2x64xf32>
    %16 = arith.subf %15, %14 : vector<2x64xf32>
    %17 = math.exp %16 : vector<2x64xf32>
    %cst_14 = arith.constant 1.000000e+00 : f32
    %18 = vector.broadcast %cst_14 : f32 to vector<2x64xf32>
    %19 = arith.addf %18, %17 : vector<2x64xf32>
    %cst_15 = arith.constant 1.000000e+00 : f32
    %20 = vector.broadcast %cst_15 : f32 to vector<2x64xf32>
    %21 = arith.divf %20, %19 : vector<2x64xf32>
    %22 = vector.shape_cast %21 : vector<2x64xf32> to vector<2x64x1xf32>
    %c0_16 = arith.constant 0 : index
    %c0_17 = arith.constant 0 : index
    %c0_18 = arith.constant 0 : index
    %23 = vector.load %arg4[%c0_16, %c0_17, %c0_18] : memref<2x64x1xf32, #tpu.memory_space<vmem>>, vector<2x64x1xf32>
    tpu.vector_store %arg4[%c0_16, %c0_17, %c0_18], %22 {strides = array<i32>} : memref<2x64x1xf32, #tpu.memory_space<vmem>>, vector<2x64x1xf32>,
    return
  }
  func.func @transform_0(%arg0: i32) -> (i32, i32, i32) {
    %c0_i32 = arith.constant 0 : i32
    %c0_i32_0 = arith.constant 0 : i32
    %c0_i32_1 = arith.constant 0 : i32
    return %arg0, %c0_i32, %c0_i32_0 : i32, i32, i32
  }
  func.func @transform_1(%arg0: i32) -> (i32, i32) {
    %c0_i32 = arith.constant 0 : i32
    %c0_i32_0 = arith.constant 0 : i32
    %c0_i32_1 = arith.constant 0 : i32
    return %c0_i32, %c0_i32_0 : i32, i32
  }
  func.func @transform_2(%arg0: i32) -> (i32, i32) {
    %c0_i32 = arith.constant 0 : i32
    %c0_i32_0 = arith.constant 0 : i32
    %c0_i32_1 = arith.constant 0 : i32
    return %c0_i32, %c0_i32_0 : i32, i32
  }
  func.func @transform_3(%arg0: i32) -> (i32, i32, i32) {
    %c0_i32 = arith.constant 0 : i32
    %c0_i32_0 = arith.constant 0 : i32
    %c0_i32_1 = arith.constant 0 : i32
    return %arg0, %c0_i32, %c0_i32_0 : i32, i32, i32
  }
}

</mosaic_0001>

<llo_original>
// kernel: tpu_custom_call.1
$region0: #{tpu_custom_call.1}
  #allocation0 [shape = 'u32[]', space=smem, size = 0x4, offset = 0x4, fixed_abs, tag = 'smem constant byte address 0x4 - core index']
  #allocation1 [shape = 'u32[144,128]{1,0:T(1,128)}', space=vmem, size = 0x12000, scoped, tag = 'internal scratch']
  %s0 = inlined_call_operand.hbm [shape: f32[2,64,256], index: 0, kind: input, shape index: {}]
  %s1 = inlined_call_operand.vmem [shape: f32[64,4], index: 1, kind: input, shape index: {}]
  %s2 = inlined_call_operand.vmem [shape: f32[4,64], index: 2, kind: input, shape index: {}]
  %s3 = inlined_call_operand.vmem [shape: f32[2,64,1], index: 3, kind: output, shape index: {}]
  %s4 = sld [smem:[#allocation0]]
  $region26: #{tpu_custom_call.1} parent=0
    _
  %s6 = ssub.s32 1, %s4
  %s7 = scalar_select 0, %s6, %s4
  $region1: #{tpu_custom_call.1} parent=0
    #allocation2 [shape = 'u8[131072]{0}', space=vmem, size = 0x20000, scoped, tag = 'input window, operand 0, single buffered']
    #allocation3 [shape = 's32[1]{0}', space=sflag, size = 0x4, scoped, tag = 'scoped memory for tpu_custom_call.1']
    %8 = vsyncpa [#allocation3], 0
    // Predicated region
    $region2: #{tpu_custom_call.1} parent=1 // pred_check
      _
    $region3: #{tpu_custom_call.1} parent=1 // pred_check_branch
      %10 = sbr.rel (0) target = $region5
    $region4: #{tpu_custom_call.1} parent=1 // pred_region
      %s12 = ssub.s32 4096, 4096
      %13 = vsyncadd [#allocation3], %s12
      %s14 = sshll.u32 [#allocation2], 4
      %s15 = int_to_ptr.vmem [resolvable:$true] %s14
      %20 = dma.hbm_to_vmem [thread:$0]  %s0, 4096, %s15, [#allocation3], 256, 256, 16
    $region5: #{tpu_custom_call.1} parent=1 // pred_fallthru
      _
    // Predicated region
    $region6: #{tpu_custom_call.1} parent=1 // pred_check
      _
    $region7: #{tpu_custom_call.1} parent=1 // pred_check_branch
      %22 = sbr.rel (0) target = $region9
    $region8: #{tpu_custom_call.1} parent=1 // pred_region
      _
    $region9: #{tpu_custom_call.1} parent=1 // pred_fallthru
      _
    // Predicated region
    $region10: #{tpu_custom_call.1} parent=1 // pred_check
      _
    $region11: #{tpu_custom_call.1} parent=1 // pred_check_branch
      %24 = sbr.rel (0) target = $region13
    $region12: #{tpu_custom_call.1} parent=1 // pred_region
      _
    $region13: #{tpu_custom_call.1} parent=1 // pred_fallthru
      _
    // Predicated region
    $region14: #{tpu_custom_call.1} parent=1 // pred_check
      _
    $region15: #{tpu_custom_call.1} parent=1 // pred_check_branch
      %26 = sbr.rel (0) target = $region17
    $region16: #{tpu_custom_call.1} parent=1 // pred_region
      %27 = dma.done [#allocation3], 4096
    $region17: #{tpu_custom_call.1} parent=1 // pred_fallthru
      _
    %v28 = vld [vmem:[#allocation2] sm:$0xff]
    %v29 = vld [vmem:[#allocation2 + $0x8] sm:$0xff]
    %v30 = vld [vmem:[#allocation2 + $0x10] sm:$0xff]
    %v31 = vld [vmem:[#allocation2 + $0x18] sm:$0xff]
    %v32 = vld [vmem:[#allocation2 + $0x20] sm:$0xff]
    %v33 = vld [vmem:[#allocation2 + $0x28] sm:$0xff]
    %v34 = vld [vmem:[#allocation2 + $0x30] sm:$0xff]
    %v35 = vld [vmem:[#allocation2 + $0x38] sm:$0xff]
    %v36 = vld [vmem:[#allocation2 + $0x40] sm:$0xff]
    %v37 = vld [vmem:[#allocation2 + $0x48] sm:$0xff]
    %v38 = vld [vmem:[#allocation2 + $0x50] sm:$0xff]
    %v39 = vld [vmem:[#allocation2 + $0x58] sm:$0xff]
    %v40 = vld [vmem:[#allocation2 + $0x60] sm:$0xff]
    %v41 = vld [vmem:[#allocation2 + $0x68] sm:$0xff]
    %v42 = vld [vmem:[#allocation2 + $0x70] sm:$0xff]
    %v43 = vld [vmem:[#allocation2 + $0x78] sm:$0xff]
    %v44 = vld [vmem:[#allocation2 + $0x80] sm:$0xff]
    %v45 = vld [vmem:[#allocation2 + $0x88] sm:$0xff]
    %v46 = vld [vmem:[#allocation2 + $0x90] sm:$0xff]
    %v47 = vld [vmem:[#allocation2 + $0x98] sm:$0xff]
    %v48 = vld [vmem:[#allocation2 + $0xa0] sm:$0xff]
    %v49 = vld [vmem:[#allocation2 + $0xa8] sm:$0xff]
    %v50 = vld [vmem:[#allocation2 + $0xb0] sm:$0xff]
    %v51 = vld [vmem:[#allocation2 + $0xb8] sm:$0xff]
    %v52 = vld [vmem:[#allocation2 + $0xc0] sm:$0xff]
    %v53 = vld [vmem:[#allocation2 + $0xc8] sm:$0xff]
    %v54 = vld [vmem:[#allocation2 + $0xd0] sm:$0xff]
    %v55 = vld [vmem:[#allocation2 + $0xd8] sm:$0xff]
    %v56 = vld [vmem:[#allocation2 + $0xe0] sm:$0xff]
    %v57 = vld [vmem:[#allocation2 + $0xe8] sm:$0xff]
    %v58 = vld [vmem:[#allocation2 + $0xf0] sm:$0xff]
    %v59 = vld [vmem:[#allocation2 + $0xf8] sm:$0xff]
    %v60 = vadd.f32 %v28, %v29
    %61 = vadd.xlane.f32.xlu0 %v60
    %v62 = vpop.xlane.xlu0 %61
    %v63 = vadd.f32 %v30, %v31
    %64 = vadd.xlane.f32.xlu0 %v63
    %v65 = vpop.xlane.xlu0 %64
    %v66 = vadd.f32 %v32, %v33
    %67 = vadd.xlane.f32.xlu0 %v66
    %v68 = vpop.xlane.xlu0 %67
    %v69 = vadd.f32 %v34, %v35
    %70 = vadd.xlane.f32.xlu0 %v69
    %v71 = vpop.xlane.xlu0 %70
    %v72 = vadd.f32 %v36, %v37
    %73 = vadd.xlane.f32.xlu0 %v72
    %v74 = vpop.xlane.xlu0 %73
    %v75 = vadd.f32 %v38, %v39
    %76 = vadd.xlane.f32.xlu0 %v75
    %v77 = vpop.xlane.xlu0 %76
    %v78 = vadd.f32 %v40, %v41
    %79 = vadd.xlane.f32.xlu0 %v78
    %v80 = vpop.xlane.xlu0 %79
    %v81 = vadd.f32 %v42, %v43
    %82 = vadd.xlane.f32.xlu0 %v81
    %v83 = vpop.xlane.xlu0 %82
    %v84 = vadd.f32 %v44, %v45
    %85 = vadd.xlane.f32.xlu0 %v84
    %v86 = vpop.xlane.xlu0 %85
    %v87 = vadd.f32 %v46, %v47
    %88 = vadd.xlane.f32.xlu0 %v87
    %v89 = vpop.xlane.xlu0 %88
    %v90 = vadd.f32 %v48, %v49
    %91 = vadd.xlane.f32.xlu0 %v90
    %v92 = vpop.xlane.xlu0 %91
    %v93 = vadd.f32 %v50, %v51
    %94 = vadd.xlane.f32.xlu0 %v93
    %v95 = vpop.xlane.xlu0 %94
    %v96 = vadd.f32 %v52, %v53
    %97 = vadd.xlane.f32.xlu0 %v96
    %v98 = vpop.xlane.xlu0 %97
    %v99 = vadd.f32 %v54, %v55
    %100 = vadd.xlane.f32.xlu0 %v99
    %v101 = vpop.xlane.xlu0 %100
    %v102 = vadd.f32 %v56, %v57
    %103 = vadd.xlane.f32.xlu0 %v102
    %v104 = vpop.xlane.xlu0 %103
    %v105 = vadd.f32 %v58, %v59
    %106 = vadd.xlane.f32.xlu0 %v105
    %v107 = vpop.xlane.xlu0 %106
    %v108 = vmul.f32 %v62, 0.00390625
    %v109 = vmul.f32 %v65, 0.00390625
    %v110 = vmul.f32 %v68, 0.00390625
    %v111 = vmul.f32 %v71, 0.00390625
    %v112 = vmul.f32 %v74, 0.00390625
    %v113 = vmul.f32 %v77, 0.00390625
    %v114 = vmul.f32 %v80, 0.00390625
    %v115 = vmul.f32 %v83, 0.00390625
    %v116 = vmul.f32 %v86, 0.00390625
    %v117 = vmul.f32 %v89, 0.00390625
    %v118 = vmul.f32 %v92, 0.00390625
    %v119 = vmul.f32 %v95, 0.00390625
    %v120 = vmul.f32 %v98, 0.00390625
    %v121 = vmul.f32 %v101, 0.00390625
    %v122 = vmul.f32 %v104, 0.00390625
    %v123 = vmul.f32 %v107, 0.00390625
    %v124 = vmax.f32 %v28, %v29
    %125 = vmax.xlane.f32.xlu0 %v124
    %v126 = vpop.xlane.xlu0 %125
    %v127 = vmax.f32 %v30, %v31
    %128 = vmax.xlane.f32.xlu0 %v127
    %v129 = vpop.xlane.xlu0 %128
    %v130 = vmax.f32 %v32, %v33
    %131 = vmax.xlane.f32.xlu0 %v130
    %v132 = vpop.xlane.xlu0 %131
    %v133 = vmax.f32 %v34, %v35
    %134 = vmax.xlane.f32.xlu0 %v133
    %v135 = vpop.xlane.xlu0 %134
    %v136 = vmax.f32 %v36, %v37
    %137 = vmax.xlane.f32.xlu0 %v136
    %v138 = vpop.xlane.xlu0 %137
    %v139 = vmax.f32 %v38, %v39
    %140 = vmax.xlane.f32.xlu0 %v139
    %v141 = vpop.xlane.xlu0 %140
    %v142 = vmax.f32 %v40, %v41
    %143 = vmax.xlane.f32.xlu0 %v142
    %v144 = vpop.xlane.xlu0 %143
    %v145 = vmax.f32 %v42, %v43
    %146 = vmax.xlane.f32.xlu0 %v145
    %v147 = vpop.xlane.xlu0 %146
    %v148 = vmax.f32 %v44, %v45
    %149 = vmax.xlane.f32.xlu0 %v148
    %v150 = vpop.xlane.xlu0 %149
    %v151 = vmax.f32 %v46, %v47
    %152 = vmax.xlane.f32.xlu0 %v151
    %v153 = vpop.xlane.xlu0 %152
    %v154 = vmax.f32 %v48, %v49
    %155 = vmax.xlane.f32.xlu0 %v154
    %v156 = vpop.xlane.xlu0 %155
    %v157 = vmax.f32 %v50, %v51
    %158 = vmax.xlane.f32.xlu0 %v157
    %v159 = vpop.xlane.xlu0 %158
    %v160 = vmax.f32 %v52, %v53
    %161 = vmax.xlane.f32.xlu0 %v160
    %v162 = vpop.xlane.xlu0 %161
    %v163 = vmax.f32 %v54, %v55
    %164 = vmax.xlane.f32.xlu0 %v163
    %v165 = vpop.xlane.xlu0 %164
    %v166 = vmax.f32 %v56, %v57
    %167 = vmax.xlane.f32.xlu0 %v166
    %v168 = vpop.xlane.xlu0 %167
    %v169 = vmax.f32 %v58, %v59
    %170 = vmax.xlane.f32.xlu0 %v169
    %v171 = vpop.xlane.xlu0 %170
    %v172 = vld [vmem:[%s1] sm:$0xff]
    %v173 = vld [vmem:[%s1 + $0x8] sm:$0xff]
    %v174 = vld [vmem:[%s1 + $0x10] sm:$0xff]
    %v175 = vld [vmem:[%s1 + $0x18] sm:$0xff]
    %v176 = vld [vmem:[%s1 + $0x20] sm:$0xff]
    %v177 = vld [vmem:[%s1 + $0x28] sm:$0xff]
    %v178 = vld [vmem:[%s1 + $0x30] sm:$0xff]
    %v179 = vld [vmem:[%s1 + $0x38] sm:$0xff]
    %v180 = vld [vmem:[%s2] sm:$0xf]
    %v197 = vlaneseq
    %v198 = vand.u32 %v197, 127
    %v199 = vlaneseq
    %v200 = vshrl.u32 %v199, 7
    %v201 = vsub.s32 %v198, %v200
    %v202 = vrot.slane %v108, %v201
    %v203 = vadd.s32 %v198, 4294967288
    %v204 = vlaneseq
    %v205 = vshrl.u32 %v204, 7
    %v206 = vsub.s32 %v203, %v205
    %v207 = vrot.slane %v109, %v206
    %vm208 = vcmask 130112
    %v209 = vsel %vm208, %v207, %v202
    %v210 = vadd.s32 %v198, 4294967280
    %v211 = vlaneseq
    %v212 = vshrl.u32 %v211, 7
    %v213 = vsub.s32 %v210, %v212
    %v214 = vrot.slane %v110, %v213
    %vm215 = vcmask 195712
    %v216 = vsel %vm215, %v214, %v209
    %v217 = vadd.s32 %v198, 4294967272
    %v218 = vlaneseq
    %v219 = vshrl.u32 %v218, 7
    %v220 = vsub.s32 %v217, %v219
    %v221 = vrot.slane %v111, %v220
    %vm222 = vcmask 261312
    %v223 = vsel %vm222, %v221, %v216
    %v224 = vadd.s32 %v198, 4294967264
    %v225 = vlaneseq
    %v226 = vshrl.u32 %v225, 7
    %v227 = vsub.s32 %v224, %v226
    %v228 = vrot.slane %v112, %v227
    %vm229 = vcmask 326912
    %v230 = vsel %vm229, %v228, %v223
    %v231 = vadd.s32 %v198, 4294967256
    %v232 = vlaneseq
    %v233 = vshrl.u32 %v232, 7
    %v234 = vsub.s32 %v231, %v233
    %v235 = vrot.slane %v113, %v234
    %vm236 = vcmask 392512
    %v237 = vsel %vm236, %v235, %v230
    %v238 = vadd.s32 %v198, 4294967248
    %v239 = vlaneseq
    %v240 = vshrl.u32 %v239, 7
    %v241 = vsub.s32 %v238, %v240
    %v242 = vrot.slane %v114, %v241
    %vm243 = vcmask 458112
    %v244 = vsel %vm243, %v242, %v237
    %v245 = vadd.s32 %v198, 4294967240
    %v246 = vlaneseq
    %v247 = vshrl.u32 %v246, 7
    %v248 = vsub.s32 %v245, %v247
    %v249 = vrot.slane %v115, %v248
    %vm250 = vcmask 523712
    %v251 = vsel %vm250, %v249, %v244
    %v252 = vlaneseq
    %v253 = vshrl.u32 %v252, 7
    %v254 = vsub.s32 %v198, %v253
    %v255 = vrot.slane %v116, %v254
    %v256 = vlaneseq
    %v257 = vshrl.u32 %v256, 7
    %v258 = vsub.s32 %v203, %v257
    %v259 = vrot.slane %v117, %v258
    %v260 = vsel %vm208, %v259, %v255
    %v261 = vlaneseq
    %v262 = vshrl.u32 %v261, 7
    %v263 = vsub.s32 %v210, %v262
    %v264 = vrot.slane %v118, %v263
    %v265 = vsel %vm215, %v264, %v260
    %v266 = vlaneseq
    %v267 = vshrl.u32 %v266, 7
    %v268 = vsub.s32 %v217, %v267
    %v269 = vrot.slane %v119, %v268
    %v270 = vsel %vm222, %v269, %v265
    %v271 = vlaneseq
    %v272 = vshrl.u32 %v271, 7
    %v273 = vsub.s32 %v224, %v272
    %v274 = vrot.slane %v120, %v273
    %v275 = vsel %vm229, %v274, %v270
    %v276 = vlaneseq
    %v277 = vshrl.u32 %v276, 7
    %v278 = vsub.s32 %v231, %v277
    %v279 = vrot.slane %v121, %v278
    %v280 = vsel %vm236, %v279, %v275
    %v281 = vlaneseq
    %v282 = vshrl.u32 %v281, 7
    %v283 = vsub.s32 %v238, %v282
    %v284 = vrot.slane %v122, %v283
    %v285 = vsel %vm243, %v284, %v280
    %v286 = vlaneseq
    %v287 = vshrl.u32 %v286, 7
    %v288 = vsub.s32 %v245, %v287
    %v289 = vrot.slane %v123, %v288
    %v290 = vsel %vm250, %v289, %v285
    %vm291 = vcmask 1041409
    %v292 = vsel %vm291, %v290, %v251
    %vm293 = vcmask 523264
    %v294 = vsel %vm293, %v292, 0
    %296 = vmatprep.subr.mxu0 0.0
    %v297 = vand.u32 %v172, 4294901760
    %298 = vmatpush1.msra.mxu0 %v297
    %299 = vmatprep.subr.mxu0 0.0
    %v300 = vand.u32 %v173, 4294901760
    %301 = vmatpush1.msra.mxu0 %v300
    %302 = vmatprep.subr.mxu0 0.0
    %v303 = vand.u32 %v174, 4294901760
    %304 = vmatpush1.msra.mxu0 %v303
    %305 = vmatprep.subr.mxu0 0.0
    %v306 = vand.u32 %v175, 4294901760
    %307 = vmatpush1.msra.mxu0 %v306
    %308 = vmatprep.subr.mxu0 0.0
    %v309 = vand.u32 %v176, 4294901760
    %310 = vmatpush1.msra.mxu0 %v309
    %311 = vmatprep.subr.mxu0 0.0
    %v312 = vand.u32 %v177, 4294901760
    %313 = vmatpush1.msra.mxu0 %v312
    %314 = vmatprep.subr.mxu0 0.0
    %v315 = vand.u32 %v178, 4294901760
    %316 = vmatpush1.msra.mxu0 %v315
    %317 = vmatprep.subr.mxu0 0.0
    %v318 = vand.u32 %v179, 4294901760
    %319 = vmatpush1.msra.mxu0 %v318
    %320 = vmatprep.subr.mxu0 0.0
    %321 = vmatpush1.msra.mxu0 0.0
    %322 = vmatprep.subr.mxu0 0.0
    %323 = vmatpush1.msra.mxu0 0.0
    %324 = vmatprep.subr.mxu0 0.0
    %325 = vmatpush1.msra.mxu0 0.0
    %326 = vmatprep.subr.mxu0 0.0
    %327 = vmatpush1.msra.mxu0 0.0
    %328 = vmatprep.subr.mxu0 0.0
    %329 = vmatpush1.msra.mxu0 0.0
    %330 = vmatprep.subr.mxu0 0.0
    %331 = vmatpush1.msra.mxu0 0.0
    %332 = vmatprep.subr.mxu0 0.0
    %333 = vmatpush1.msra.mxu0 0.0
    %334 = vmatprep.subr.mxu0 0.0
    %335 = vmatpush1.msra.mxu0 0.0
    %336 = vmatprep.subr.mxu0 0.0
    %337 = vmatpush1.msra.mxu0 0.0
    %338 = vmatprep.subr.mxu0 0.0
    %339 = vmatpush1.msra.mxu0 0.0
    %340 = vmatprep.subr.mxu0 0.0
    %341 = vmatpush1.msra.mxu0 0.0
    %342 = vmatprep.subr.mxu0 0.0
    %343 = vmatpush1.msra.mxu0 0.0
    %344 = vmatprep.subr.mxu0 0.0
    %345 = vmatpush1.msra.mxu0 0.0
    %346 = vmatprep.subr.mxu0 0.0
    %347 = vmatpush1.msra.mxu0 0.0
    %348 = vmatprep.subr.mxu0 0.0
    %349 = vmatpush1.msra.mxu0 0.0
    %350 = vmatprep.subr.mxu0 0.0
    %351 = vmatpush1.msra.mxu0 0.0
    %352 = vmatprep.subr.mxu0 0.0
    %353 = vmatpush1.msra.mxu0 0.0
    %354 = vmatprep.subr.mxu0 0.0
    %355 = vmatpush1.msra.mxu0 0.0
    %356 = vmatprep.subr.mxu0 0.0
    %357 = vmatpush1.msra.mxu0 0.0
    %358 = vmatprep.subr.mxu0 0.0
    %359 = vmatpush1.msra.mxu0 0.0
    %360 = vmatprep.subr.mxu0 0.0
    %361 = vmatpush1.msra.mxu0 0.0
    %362 = vmatprep.subr.mxu0 0.0
    %363 = vmatpush1.msra.mxu0 0.0
    %364 = vmatprep.subr.mxu0 0.0
    %365 = vmatpush1.msra.mxu0 0.0
    %366 = vmatprep.subr.mxu0 0.0
    %367 = vmatpush1.msra.mxu0 0.0
    %368 = vmatprep.mubr.f32.mxu0 0.0
    %v369 = vand.u32 %v294, 4294901760
    %v370 = vsub.f32 %v294, %v369
    %v371 = vand.u32 %v370, 4294901760
    %v372 = vsub.f32 %v370, %v371
    %v373 = vand.u32 %v372, 4294901760
    %374 = vmatmul.mubr.f32.gmra.mrb[0].mxu0 %v373
    %v375 = vpop.f32.mrb[0].mxu0
    %v376 = vadd.f32 0.0, %v375
    %v377 = vpop.f32.mrb[0].mxu0
    %378 = vdwg.mxu0
    %379 = vmatprep.subr.mxu0 0.0
    %v380 = vand.u32 %v172, 4294901760
    %v381 = vsub.f32 %v172, %v380
    %v382 = vand.u32 %v381, 4294901760
    %v383 = vsub.f32 %v381, %v382
    %v384 = vand.u32 %v383, 4294901760
    %385 = vmatpush1.msra.mxu0 %v384
    %386 = vmatprep.subr.mxu0 0.0
    %v387 = vand.u32 %v173, 4294901760
    %v388 = vsub.f32 %v173, %v387
    %v389 = vand.u32 %v388, 4294901760
    %v390 = vsub.f32 %v388, %v389
    %v391 = vand.u32 %v390, 4294901760
    %392 = vmatpush1.msra.mxu0 %v391
    %393 = vmatprep.subr.mxu0 0.0
    %v394 = vand.u32 %v174, 4294901760
    %v395 = vsub.f32 %v174, %v394
    %v396 = vand.u32 %v395, 4294901760
    %v397 = vsub.f32 %v395, %v396
    %v398 = vand.u32 %v397, 4294901760
    %399 = vmatpush1.msra.mxu0 %v398
    %400 = vmatprep.subr.mxu0 0.0
    %v401 = vand.u32 %v175, 4294901760
    %v402 = vsub.f32 %v175, %v401
    %v403 = vand.u32 %v402, 4294901760
    %v404 = vsub.f32 %v402, %v403
    %v405 = vand.u32 %v404, 4294901760
    %406 = vmatpush1.msra.mxu0 %v405
    %407 = vmatprep.subr.mxu0 0.0
    %v408 = vand.u32 %v176, 4294901760
    %v409 = vsub.f32 %v176, %v408
    %v410 = vand.u32 %v409, 4294901760
    %v411 = vsub.f32 %v409, %v410
    %v412 = vand.u32 %v411, 4294901760
    %413 = vmatpush1.msra.mxu0 %v412
    %414 = vmatprep.subr.mxu0 0.0
    %v415 = vand.u32 %v177, 4294901760
    %v416 = vsub.f32 %v177, %v415
    %v417 = vand.u32 %v416, 4294901760
    %v418 = vsub.f32 %v416, %v417
    %v419 = vand.u32 %v418, 4294901760
    %420 = vmatpush1.msra.mxu0 %v419
    %421 = vmatprep.subr.mxu0 0.0
    %v422 = vand.u32 %v178, 4294901760
    %v423 = vsub.f32 %v178, %v422
    %v424 = vand.u32 %v423, 4294901760
    %v425 = vsub.f32 %v423, %v424
    %v426 = vand.u32 %v425, 4294901760
    %427 = vmatpush1.msra.mxu0 %v426
    %428 = vmatprep.subr.mxu0 0.0
    %v429 = vand.u32 %v179, 4294901760
    %v430 = vsub.f32 %v179, %v429
    %v431 = vand.u32 %v430, 4294901760
    %v432 = vsub.f32 %v430, %v431
    %v433 = vand.u32 %v432, 4294901760
    %434 = vmatpush1.msra.mxu0 %v433
    %435 = vmatprep.subr.mxu0 0.0
    %436 = vmatpush1.msra.mxu0 0.0
    %437 = vmatprep.subr.mxu0 0.0
    %438 = vmatpush1.msra.mxu0 0.0
    %439 = vmatprep.subr.mxu0 0.0
    %440 = vmatpush1.msra.mxu0 0.0
    %441 = vmatprep.subr.mxu0 0.0
    %442 = vmatpush1.msra.mxu0 0.0
    %443 = vmatprep.subr.mxu0 0.0
    %444 = vmatpush1.msra.mxu0 0.0
    %445 = vmatprep.subr.mxu0 0.0
    %446 = vmatpush1.msra.mxu0 0.0
    %447 = vmatprep.subr.mxu0 0.0
    %448 = vmatpush1.msra.mxu0 0.0
    %449 = vmatprep.subr.mxu0 0.0
    %450 = vmatpush1.msra.mxu0 0.0
    %451 = vmatprep.subr.mxu0 0.0
    %452 = vmatpush1.msra.mxu0 0.0
    %453 = vmatprep.subr.mxu0 0.0
    %454 = vmatpush1.msra.mxu0 0.0
    %455 = vmatprep.subr.mxu0 0.0
    %456 = vmatpush1.msra.mxu0 0.0
    %457 = vmatprep.subr.mxu0 0.0
    %458 = vmatpush1.msra.mxu0 0.0
    %459 = vmatprep.subr.mxu0 0.0
    %460 = vmatpush1.msra.mxu0 0.0
    %461 = vmatprep.subr.mxu0 0.0
    %462 = vmatpush1.msra.mxu0 0.0
    %463 = vmatprep.subr.mxu0 0.0
    %464 = vmatpush1.msra.mxu0 0.0
    %465 = vmatprep.subr.mxu0 0.0
    %466 = vmatpush1.msra.mxu0 0.0
    %467 = vmatprep.subr.mxu0 0.0
    %468 = vmatpush1.msra.mxu0 0.0
    %469 = vmatprep.subr.mxu0 0.0
    %470 = vmatpush1.msra.mxu0 0.0
    %471 = vmatprep.subr.mxu0 0.0
    %472 = vmatpush1.msra.mxu0 0.0
    %473 = vmatprep.subr.mxu0 0.0
    %474 = vmatpush1.msra.mxu0 0.0
    %475 = vmatprep.subr.mxu0 0.0
    %476 = vmatpush1.msra.mxu0 0.0
    %477 = vmatprep.subr.mxu0 0.0
    %478 = vmatpush1.msra.mxu0 0.0
    %479 = vmatprep.subr.mxu0 0.0
    %480 = vmatpush1.msra.mxu0 0.0
    %481 = vmatprep.subr.mxu0 0.0
    %482 = vmatpush1.msra.mxu0 0.0
    %483 = vmatprep.mubr.f32.mxu0 0.0
    %v484 = vand.u32 %v294, 4294901760
    %485 = vmatmul.mubr.f32.gmra.mrb[0].mxu0 %v484
    %v486 = vpop.f32.mrb[0].mxu0
    %v487 = vadd.f32 %v376, %v486
    %v488 = vpop.f32.mrb[0].mxu0
    %489 = vdwg.mxu0
    %490 = vmatprep.subr.mxu0 0.0
    %v491 = vand.u32 %v172, 4294901760
    %v492 = vsub.f32 %v172, %v491
    %493 = vmatpush1.msra.mxu0 %v492
    %494 = vmatprep.subr.mxu0 0.0
    %v495 = vand.u32 %v173, 4294901760
    %v496 = vsub.f32 %v173, %v495
    %497 = vmatpush1.msra.mxu0 %v496
    %498 = vmatprep.subr.mxu0 0.0
    %v499 = vand.u32 %v174, 4294901760
    %v500 = vsub.f32 %v174, %v499
    %501 = vmatpush1.msra.mxu0 %v500
    %502 = vmatprep.subr.mxu0 0.0
    %v503 = vand.u32 %v175, 4294901760
    %v504 = vsub.f32 %v175, %v503
    %505 = vmatpush1.msra.mxu0 %v504
    %506 = vmatprep.subr.mxu0 0.0
    %v507 = vand.u32 %v176, 4294901760
    %v508 = vsub.f32 %v176, %v507
    %509 = vmatpush1.msra.mxu0 %v508
    %510 = vmatprep.subr.mxu0 0.0
    %v511 = vand.u32 %v177, 4294901760
    %v512 = vsub.f32 %v177, %v511
    %513 = vmatpush1.msra.mxu0 %v512
    %514 = vmatprep.subr.mxu0 0.0
    %v515 = vand.u32 %v178, 4294901760
    %v516 = vsub.f32 %v178, %v515
    %517 = vmatpush1.msra.mxu0 %v516
    %518 = vmatprep.subr.mxu0 0.0
    %v519 = vand.u32 %v179, 4294901760
    %v520 = vsub.f32 %v179, %v519
    %521 = vmatpush1.msra.mxu0 %v520
    %522 = vmatprep.subr.mxu0 0.0
    %523 = vmatpush1.msra.mxu0 0.0
    %524 = vmatprep.subr.mxu0 0.0
    %525 = vmatpush1.msra.mxu0 0.0
    %526 = vmatprep.subr.mxu0 0.0
    %527 = vmatpush1.msra.mxu0 0.0
    %528 = vmatprep.subr.mxu0 0.0
    %529 = vmatpush1.msra.mxu0 0.0
    %530 = vmatprep.subr.mxu0 0.0
    %531 = vmatpush1.msra.mxu0 0.0
    %532 = vmatprep.subr.mxu0 0.0
    %533 = vmatpush1.msra.mxu0 0.0
    %534 = vmatprep.subr.mxu0 0.0
    %535 = vmatpush1.msra.mxu0 0.0
    %536 = vmatprep.subr.mxu0 0.0
    %537 = vmatpush1.msra.mxu0 0.0
    %538 = vmatprep.subr.mxu0 0.0
    %539 = vmatpush1.msra.mxu0 0.0
    %540 = vmatprep.subr.mxu0 0.0
    %541 = vmatpush1.msra.mxu0 0.0
    %542 = vmatprep.subr.mxu0 0.0
    %543 = vmatpush1.msra.mxu0 0.0
    %544 = vmatprep.subr.mxu0 0.0
    %545 = vmatpush1.msra.mxu0 0.0
    %546 = vmatprep.subr.mxu0 0.0
    %547 = vmatpush1.msra.mxu0 0.0
    %548 = vmatprep.subr.mxu0 0.0
    %549 = vmatpush1.msra.mxu0 0.0
    %550 = vmatprep.subr.mxu0 0.0
    %551 = vmatpush1.msra.mxu0 0.0
    %552 = vmatprep.subr.mxu0 0.0
    %553 = vmatpush1.msra.mxu0 0.0
    %554 = vmatprep.subr.mxu0 0.0
    %555 = vmatpush1.msra.mxu0 0.0
    %556 = vmatprep.subr.mxu0 0.0
    %557 = vmatpush1.msra.mxu0 0.0
    %558 = vmatprep.subr.mxu0 0.0
    %559 = vmatpush1.msra.mxu0 0.0
    %560 = vmatprep.subr.mxu0 0.0
    %561 = vmatpush1.msra.mxu0 0.0
    %562 = vmatprep.subr.mxu0 0.0
    %563 = vmatpush1.msra.mxu0 0.0
    %564 = vmatprep.subr.mxu0 0.0
    %565 = vmatpush1.msra.mxu0 0.0
    %566 = vmatprep.subr.mxu0 0.0
    %567 = vmatpush1.msra.mxu0 0.0
    %568 = vmatprep.subr.mxu0 0.0
    %569 = vmatpush1.msra.mxu0 0.0
    %570 = vmatprep.mubr.f32.mxu0 0.0
    %v571 = vand.u32 %v294, 4294901760
    %v572 = vsub.f32 %v294, %v571
    %573 = vmatmul.mubr.f32.gmra.mrb[0].mxu0 %v572
    %v574 = vpop.f32.mrb[0].mxu0
    %v575 = vadd.f32 %v487, %v574
    %v576 = vpop.f32.mrb[0].mxu0
    %577 = vdwg.mxu0
    %578 = vmatprep.subr.mxu0 0.0
    %v579 = vand.u32 %v172, 4294901760
    %580 = vmatpush1.msra.mxu0 %v579
    %581 = vmatprep.subr.mxu0 0.0
    %v582 = vand.u32 %v173, 4294901760
    %583 = vmatpush1.msra.mxu0 %v582
    %584 = vmatprep.subr.mxu0 0.0
    %v585 = vand.u32 %v174, 4294901760
    %586 = vmatpush1.msra.mxu0 %v585
    %587 = vmatprep.subr.mxu0 0.0
    %v588 = vand.u32 %v175, 4294901760
    %589 = vmatpush1.msra.mxu0 %v588
    %590 = vmatprep.subr.mxu0 0.0
    %v591 = vand.u32 %v176, 4294901760
    %592 = vmatpush1.msra.mxu0 %v591
    %593 = vmatprep.subr.mxu0 0.0
    %v594 = vand.u32 %v177, 4294901760
    %595 = vmatpush1.msra.mxu0 %v594
    %596 = vmatprep.subr.mxu0 0.0
    %v597 = vand.u32 %v178, 4294901760
    %598 = vmatpush1.msra.mxu0 %v597
    %599 = vmatprep.subr.mxu0 0.0
    %v600 = vand.u32 %v179, 4294901760
    %601 = vmatpush1.msra.mxu0 %v600
    %602 = vmatprep.subr.mxu0 0.0
    %603 = vmatpush1.msra.mxu0 0.0
    %604 = vmatprep.subr.mxu0 0.0
    %605 = vmatpush1.msra.mxu0 0.0
    %606 = vmatprep.subr.mxu0 0.0
    %607 = vmatpush1.msra.mxu0 0.0
    %608 = vmatprep.subr.mxu0 0.0
    %609 = vmatpush1.msra.mxu0 0.0
    %610 = vmatprep.subr.mxu0 0.0
    %611 = vmatpush1.msra.mxu0 0.0
    %612 = vmatprep.subr.mxu0 0.0
    %613 = vmatpush1.msra.mxu0 0.0
    %614 = vmatprep.subr.mxu0 0.0
    %615 = vmatpush1.msra.mxu0 0.0
    %616 = vmatprep.subr.mxu0 0.0
    %617 = vmatpush1.msra.mxu0 0.0
    %618 = vmatprep.subr.mxu0 0.0
    %619 = vmatpush1.msra.mxu0 0.0
    %620 = vmatprep.subr.mxu0 0.0
    %621 = vmatpush1.msra.mxu0 0.0
    %622 = vmatprep.subr.mxu0 0.0
    %623 = vmatpush1.msra.mxu0 0.0
    %624 = vmatprep.subr.mxu0 0.0
    %625 = vmatpush1.msra.mxu0 0.0
    %626 = vmatprep.subr.mxu0 0.0
    %627 = vmatpush1.msra.mxu0 0.0
    %628 = vmatprep.subr.mxu0 0.0
    %629 = vmatpush1.msra.mxu0 0.0
    %630 = vmatprep.subr.mxu0 0.0
    %631 = vmatpush1.msra.mxu0 0.0
    %632 = vmatprep.subr.mxu0 0.0
    %633 = vmatpush1.msra.mxu0 0.0
    %634 = vmatprep.subr.mxu0 0.0
    %635 = vmatpush1.msra.mxu0 0.0
    %636 = vmatprep.subr.mxu0 0.0
    %637 = vmatpush1.msra.mxu0 0.0
    %638 = vmatprep.subr.mxu0 0.0
    %639 = vmatpush1.msra.mxu0 0.0
    %640 = vmatprep.subr.mxu0 0.0
    %641 = vmatpush1.msra.mxu0 0.0
    %642 = vmatprep.subr.mxu0 0.0
    %643 = vmatpush1.msra.mxu0 0.0
    %644 = vmatprep.subr.mxu0 0.0
    %645 = vmatpush1.msra.mxu0 0.0
    %646 = vmatprep.subr.mxu0 0.0
    %647 = vmatpush1.msra.mxu0 0.0
    %648 = vmatprep.subr.mxu0 0.0
    %649 = vmatpush1.msra.mxu0 0.0
    %650 = vmatprep.mubr.f32.mxu0 0.0
    %v651 = vand.u32 %v294, 4294901760
    %v652 = vsub.f32 %v294, %v651
    %v653 = vand.u32 %v652, 4294901760
    %654 = vmatmul.mubr.f32.gmra.mrb[0].mxu0 %v653
    %v655 = vpop.f32.mrb[0].mxu0
    %v656 = vadd.f32 %v575, %v655
    %v657 = vpop.f32.mrb[0].mxu0
    %658 = vdwg.mxu0
    %659 = vmatprep.subr.mxu0 0.0
    %v660 = vand.u32 %v172, 4294901760
    %v661 = vsub.f32 %v172, %v660
    %v662 = vand.u32 %v661, 4294901760
    %663 = vmatpush1.msra.mxu0 %v662
    %664 = vmatprep.subr.mxu0 0.0
    %v665 = vand.u32 %v173, 4294901760
    %v666 = vsub.f32 %v173, %v665
    %v667 = vand.u32 %v666, 4294901760
    %668 = vmatpush1.msra.mxu0 %v667
    %669 = vmatprep.subr.mxu0 0.0
    %v670 = vand.u32 %v174, 4294901760
    %v671 = vsub.f32 %v174, %v670
    %v672 = vand.u32 %v671, 4294901760
    %673 = vmatpush1.msra.mxu0 %v672
    %674 = vmatprep.subr.mxu0 0.0
    %v675 = vand.u32 %v175, 4294901760
    %v676 = vsub.f32 %v175, %v675
    %v677 = vand.u32 %v676, 4294901760
    %678 = vmatpush1.msra.mxu0 %v677
    %679 = vmatprep.subr.mxu0 0.0
    %v680 = vand.u32 %v176, 4294901760
    %v681 = vsub.f32 %v176, %v680
    %v682 = vand.u32 %v681, 4294901760
    %683 = vmatpush1.msra.mxu0 %v682
    %684 = vmatprep.subr.mxu0 0.0
    %v685 = vand.u32 %v177, 4294901760
    %v686 = vsub.f32 %v177, %v685
    %v687 = vand.u32 %v686, 4294901760
    %688 = vmatpush1.msra.mxu0 %v687
    %689 = vmatprep.subr.mxu0 0.0
    %v690 = vand.u32 %v178, 4294901760
    %v691 = vsub.f32 %v178, %v690
    %v692 = vand.u32 %v691, 4294901760
    %693 = vmatpush1.msra.mxu0 %v692
    %694 = vmatprep.subr.mxu0 0.0
    %v695 = vand.u32 %v179, 4294901760
    %v696 = vsub.f32 %v179, %v695
    %v697 = vand.u32 %v696, 4294901760
    %698 = vmatpush1.msra.mxu0 %v697
    %699 = vmatprep.subr.mxu0 0.0
    %700 = vmatpush1.msra.mxu0 0.0
    %701 = vmatprep.subr.mxu0 0.0
    %702 = vmatpush1.msra.mxu0 0.0
    %703 = vmatprep.subr.mxu0 0.0
    %704 = vmatpush1.msra.mxu0 0.0
    %705 = vmatprep.subr.mxu0 0.0
    %706 = vmatpush1.msra.mxu0 0.0
    %707 = vmatprep.subr.mxu0 0.0
    %708 = vmatpush1.msra.mxu0 0.0
    %709 = vmatprep.subr.mxu0 0.0
    %710 = vmatpush1.msra.mxu0 0.0
    %711 = vmatprep.subr.mxu0 0.0
    %712 = vmatpush1.msra.mxu0 0.0
    %713 = vmatprep.subr.mxu0 0.0
    %714 = vmatpush1.msra.mxu0 0.0
    %715 = vmatprep.subr.mxu0 0.0
    %716 = vmatpush1.msra.mxu0 0.0
    %717 = vmatprep.subr.mxu0 0.0
    %718 = vmatpush1.msra.mxu0 0.0
    %719 = vmatprep.subr.mxu0 0.0
    %720 = vmatpush1.msra.mxu0 0.0
    %721 = vmatprep.subr.mxu0 0.0
    %722 = vmatpush1.msra.mxu0 0.0
    %723 = vmatprep.subr.mxu0 0.0
    %724 = vmatpush1.msra.mxu0 0.0
    %725 = vmatprep.subr.mxu0 0.0
    %726 = vmatpush1.msra.mxu0 0.0
    %727 = vmatprep.subr.mxu0 0.0
    %728 = vmatpush1.msra.mxu0 0.0
    %729 = vmatprep.subr.mxu0 0.0
    %730 = vmatpush1.msra.mxu0 0.0
    %731 = vmatprep.subr.mxu0 0.0
    %732 = vmatpush1.msra.mxu0 0.0
    %733 = vmatprep.subr.mxu0 0.0
    %734 = vmatpush1.msra.mxu0 0.0
    %735 = vmatprep.subr.mxu0 0.0
    %736 = vmatpush1.msra.mxu0 0.0
    %737 = vmatprep.subr.mxu0 0.0
    %738 = vmatpush1.msra.mxu0 0.0
    %739 = vmatprep.subr.mxu0 0.0
    %740 = vmatpush1.msra.mxu0 0.0
    %741 = vmatprep.subr.mxu0 0.0
    %742 = vmatpush1.msra.mxu0 0.0
    %743 = vmatprep.subr.mxu0 0.0
    %744 = vmatpush1.msra.mxu0 0.0
    %745 = vmatprep.subr.mxu0 0.0
    %746 = vmatpush1.msra.mxu0 0.0
    %747 = vmatprep.mubr.f32.mxu0 0.0
    %v748 = vand.u32 %v294, 4294901760
    %749 = vmatmul.mubr.f32.gmra.mrb[0].mxu0 %v748
    %v750 = vpop.f32.mrb[0].mxu0
    %v751 = vadd.f32 %v656, %v750
    %v752 = vpop.f32.mrb[0].mxu0
    %753 = vdwg.mxu0
    %754 = vmatprep.subr.mxu0 0.0
    %v755 = vand.u32 %v172, 4294901760
    %756 = vmatpush1.msra.mxu0 %v755
    %757 = vmatprep.subr.mxu0 0.0
    %v758 = vand.u32 %v173, 4294901760
    %759 = vmatpush1.msra.mxu0 %v758
    %760 = vmatprep.subr.mxu0 0.0
    %v761 = vand.u32 %v174, 4294901760
    %762 = vmatpush1.msra.mxu0 %v761
    %763 = vmatprep.subr.mxu0 0.0
    %v764 = vand.u32 %v175, 4294901760
    %765 = vmatpush1.msra.mxu0 %v764
    %766 = vmatprep.subr.mxu0 0.0
    %v767 = vand.u32 %v176, 4294901760
    %768 = vmatpush1.msra.mxu0 %v767
    %769 = vmatprep.subr.mxu0 0.0
    %v770 = vand.u32 %v177, 4294901760
    %771 = vmatpush1.msra.mxu0 %v770
    %772 = vmatprep.subr.mxu0 0.0
    %v773 = vand.u32 %v178, 4294901760
    %774 = vmatpush1.msra.mxu0 %v773
    %775 = vmatprep.subr.mxu0 0.0
    %v776 = vand.u32 %v179, 4294901760
    %777 = vmatpush1.msra.mxu0 %v776
    %778 = vmatprep.subr.mxu0 0.0
    %779 = vmatpush1.msra.mxu0 0.0
    %780 = vmatprep.subr.mxu0 0.0
    %781 = vmatpush1.msra.mxu0 0.0
    %782 = vmatprep.subr.mxu0 0.0
    %783 = vmatpush1.msra.mxu0 0.0
    %784 = vmatprep.subr.mxu0 0.0
    %785 = vmatpush1.msra.mxu0 0.0
    %786 = vmatprep.subr.mxu0 0.0
    %787 = vmatpush1.msra.mxu0 0.0
    %788 = vmatprep.subr.mxu0 0.0
    %789 = vmatpush1.msra.mxu0 0.0
    %790 = vmatprep.subr.mxu0 0.0
    %791 = vmatpush1.msra.mxu0 0.0
    %792 = vmatprep.subr.mxu0 0.0
    %793 = vmatpush1.msra.mxu0 0.0
    %794 = vmatprep.subr.mxu0 0.0
    %795 = vmatpush1.msra.mxu0 0.0
    %796 = vmatprep.subr.mxu0 0.0
    %797 = vmatpush1.msra.mxu0 0.0
    %798 = vmatprep.subr.mxu0 0.0
    %799 = vmatpush1.msra.mxu0 0.0
    %800 = vmatprep.subr.mxu0 0.0
    %801 = vmatpush1.msra.mxu0 0.0
    %802 = vmatprep.subr.mxu0 0.0
    %803 = vmatpush1.msra.mxu0 0.0
    %804 = vmatprep.subr.mxu0 0.0
    %805 = vmatpush1.msra.mxu0 0.0
    %806 = vmatprep.subr.mxu0 0.0
    %807 = vmatpush1.msra.mxu0 0.0
    %808 = vmatprep.subr.mxu0 0.0
    %809 = vmatpush1.msra.mxu0 0.0
    %810 = vmatprep.subr.mxu0 0.0
    %811 = vmatpush1.msra.mxu0 0.0
    %812 = vmatprep.subr.mxu0 0.0
    %813 = vmatpush1.msra.mxu0 0.0
    %814 = vmatprep.subr.mxu0 0.0
    %815 = vmatpush1.msra.mxu0 0.0
    %816 = vmatprep.subr.mxu0 0.0
    %817 = vmatpush1.msra.mxu0 0.0
    %818 = vmatprep.subr.mxu0 0.0
    %819 = vmatpush1.msra.mxu0 0.0
    %820 = vmatprep.subr.mxu0 0.0
    %821 = vmatpush1.msra.mxu0 0.0
    %822 = vmatprep.subr.mxu0 0.0
    %823 = vmatpush1.msra.mxu0 0.0
    %824 = vmatprep.subr.mxu0 0.0
    %825 = vmatpush1.msra.mxu0 0.0
    %826 = vmatprep.mubr.f32.mxu0 0.0
    %v827 = vand.u32 %v294, 4294901760
    %828 = vmatmul.mubr.f32.gmra.mrb[0].mxu0 %v827
    %v829 = vpop.f32.mrb[0].mxu0
    %v830 = vadd.f32 %v751, %v829
    %v831 = vpop.f32.mrb[0].mxu0
    %832 = vdwg.mxu0
    %v833 = vmax.f32 %v830, 0.0
    %v850 = vlaneseq
    %v851 = vshrl.u32 %v850, 7
    %v852 = vsub.s32 %v198, %v851
    %v853 = vrot.slane %v126, %v852
    %v854 = vlaneseq
    %v855 = vshrl.u32 %v854, 7
    %v856 = vsub.s32 %v203, %v855
    %v857 = vrot.slane %v129, %v856
    %v858 = vsel %vm208, %v857, %v853
    %v859 = vlaneseq
    %v860 = vshrl.u32 %v859, 7
    %v861 = vsub.s32 %v210, %v860
    %v862 = vrot.slane %v132, %v861
    %v863 = vsel %vm215, %v862, %v858
    %v864 = vlaneseq
    %v865 = vshrl.u32 %v864, 7
    %v866 = vsub.s32 %v217, %v865
    %v867 = vrot.slane %v135, %v866
    %v868 = vsel %vm222, %v867, %v863
    %v869 = vlaneseq
    %v870 = vshrl.u32 %v869, 7
    %v871 = vsub.s32 %v224, %v870
    %v872 = vrot.slane %v138, %v871
    %v873 = vsel %vm229, %v872, %v868
    %v874 = vlaneseq
    %v875 = vshrl.u32 %v874, 7
    %v876 = vsub.s32 %v231, %v875
    %v877 = vrot.slane %v141, %v876
    %v878 = vsel %vm236, %v877, %v873
    %v879 = vlaneseq
    %v880 = vshrl.u32 %v879, 7
    %v881 = vsub.s32 %v238, %v880
    %v882 = vrot.slane %v144, %v881
    %v883 = vsel %vm243, %v882, %v878
    %v884 = vlaneseq
    %v885 = vshrl.u32 %v884, 7
    %v886 = vsub.s32 %v245, %v885
    %v887 = vrot.slane %v147, %v886
    %v888 = vsel %vm250, %v887, %v883
    %v889 = vlaneseq
    %v890 = vshrl.u32 %v889, 7
    %v891 = vsub.s32 %v198, %v890
    %v892 = vrot.slane %v150, %v891
    %v893 = vlaneseq
    %v894 = vshrl.u32 %v893, 7
    %v895 = vsub.s32 %v203, %v894
    %v896 = vrot.slane %v153, %v895
    %v897 = vsel %vm208, %v896, %v892
    %v898 = vlaneseq
    %v899 = vshrl.u32 %v898, 7
    %v900 = vsub.s32 %v210, %v899
    %v901 = vrot.slane %v156, %v900
    %v902 = vsel %vm215, %v901, %v897
    %v903 = vlaneseq
    %v904 = vshrl.u32 %v903, 7
    %v905 = vsub.s32 %v217, %v904
    %v906 = vrot.slane %v159, %v905
    %v907 = vsel %vm222, %v906, %v902
    %v908 = vlaneseq
    %v909 = vshrl.u32 %v908, 7
    %v910 = vsub.s32 %v224, %v909
    %v911 = vrot.slane %v162, %v910
    %v912 = vsel %vm229, %v911, %v907
    %v913 = vlaneseq
    %v914 = vshrl.u32 %v913, 7
    %v915 = vsub.s32 %v231, %v914
    %v916 = vrot.slane %v165, %v915
    %v917 = vsel %vm236, %v916, %v912
    %v918 = vlaneseq
    %v919 = vshrl.u32 %v918, 7
    %v920 = vsub.s32 %v238, %v919
    %v921 = vrot.slane %v168, %v920
    %v922 = vsel %vm243, %v921, %v917
    %v923 = vlaneseq
    %v924 = vshrl.u32 %v923, 7
    %v925 = vsub.s32 %v245, %v924
    %v926 = vrot.slane %v171, %v925
    %v927 = vsel %vm250, %v926, %v922
    %v928 = vsel %vm291, %v927, %v888
    %v929 = vsel %vm293, %v928, 0
    %931 = vmatprep.subr.mxu0 0.0
    %v932 = vand.u32 %v172, 4294901760
    %933 = vmatpush1.msra.mxu0 %v932
    %934 = vmatprep.subr.mxu0 0.0
    %v935 = vand.u32 %v173, 4294901760
    %936 = vmatpush1.msra.mxu0 %v935
    %937 = vmatprep.subr.mxu0 0.0
    %v938 = vand.u32 %v174, 4294901760
    %939 = vmatpush1.msra.mxu0 %v938
    %940 = vmatprep.subr.mxu0 0.0
    %v941 = vand.u32 %v175, 4294901760
    %942 = vmatpush1.msra.mxu0 %v941
    %943 = vmatprep.subr.mxu0 0.0
    %v944 = vand.u32 %v176, 4294901760
    %945 = vmatpush1.msra.mxu0 %v944
    %946 = vmatprep.subr.mxu0 0.0
    %v947 = vand.u32 %v177, 4294901760
    %948 = vmatpush1.msra.mxu0 %v947
    %949 = vmatprep.subr.mxu0 0.0
    %v950 = vand.u32 %v178, 4294901760
    %951 = vmatpush1.msra.mxu0 %v950
    %952 = vmatprep.subr.mxu0 0.0
    %v953 = vand.u32 %v179, 4294901760
    %954 = vmatpush1.msra.mxu0 %v953
    %955 = vmatprep.subr.mxu0 0.0
    %956 = vmatpush1.msra.mxu0 0.0
    %957 = vmatprep.subr.mxu0 0.0
    %958 = vmatpush1.msra.mxu0 0.0
    %959 = vmatprep.subr.mxu0 0.0
    %960 = vmatpush1.msra.mxu0 0.0
    %961 = vmatprep.subr.mxu0 0.0
    %962 = vmatpush1.msra.mxu0 0.0
    %963 = vmatprep.subr.mxu0 0.0
    %964 = vmatpush1.msra.mxu0 0.0
    %965 = vmatprep.subr.mxu0 0.0
    %966 = vmatpush1.msra.mxu0 0.0
    %967 = vmatprep.subr.mxu0 0.0
    %968 = vmatpush1.msra.mxu0 0.0
    %969 = vmatprep.subr.mxu0 0.0
    %970 = vmatpush1.msra.mxu0 0.0
    %971 = vmatprep.subr.mxu0 0.0
    %972 = vmatpush1.msra.mxu0 0.0
    %973 = vmatprep.subr.mxu0 0.0
    %974 = vmatpush1.msra.mxu0 0.0
    %975 = vmatprep.subr.mxu0 0.0
    %976 = vmatpush1.msra.mxu0 0.0
    %977 = vmatprep.subr.mxu0 0.0
    %978 = vmatpush1.msra.mxu0 0.0
    %979 = vmatprep.subr.mxu0 0.0
    %980 = vmatpush1.msra.mxu0 0.0
    %981 = vmatprep.subr.mxu0 0.0
    %982 = vmatpush1.msra.mxu0 0.0
    %983 = vmatprep.subr.mxu0 0.0
    %984 = vmatpush1.msra.mxu0 0.0
    %985 = vmatprep.subr.mxu0 0.0
    %986 = vmatpush1.msra.mxu0 0.0
    %987 = vmatprep.subr.mxu0 0.0
    %988 = vmatpush1.msra.mxu0 0.0
    %989 = vmatprep.subr.mxu0 0.0
    %990 = vmatpush1.msra.mxu0 0.0
    %991 = vmatprep.subr.mxu0 0.0
    %992 = vmatpush1.msra.mxu0 0.0
    %993 = vmatprep.subr.mxu0 0.0
    %994 = vmatpush1.msra.mxu0 0.0
    %995 = vmatprep.subr.mxu0 0.0
    %996 = vmatpush1.msra.mxu0 0.0
    %997 = vmatprep.subr.mxu0 0.0
    %998 = vmatpush1.msra.mxu0 0.0
    %999 = vmatprep.subr.mxu0 0.0
    %1000 = vmatpush1.msra.mxu0 0.0
    %1001 = vmatprep.subr.mxu0 0.0
    %1002 = vmatpush1.msra.mxu0 0.0
    %1003 = vmatprep.mubr.f32.mxu0 0.0
    %v1004 = vand.u32 %v929, 4294901760
    %v1005 = vsub.f32 %v929, %v1004
    %v1006 = vand.u32 %v1005, 4294901760
    %v1007 = vsub.f32 %v1005, %v1006
    %v1008 = vand.u32 %v1007, 4294901760
    %1009 = vmatmul.mubr.f32.gmra.mrb[0].mxu0 %v1008
    %v1010 = vpop.f32.mrb[0].mxu0
    %v1011 = vadd.f32 0.0, %v1010
    %v1012 = vpop.f32.mrb[0].mxu0
    %1013 = vdwg.mxu0
    %1014 = vmatprep.subr.mxu0 0.0
    %v1015 = vand.u32 %v172, 4294901760
    %v1016 = vsub.f32 %v172, %v1015
    %v1017 = vand.u32 %v1016, 4294901760
    %v1018 = vsub.f32 %v1016, %v1017
    %v1019 = vand.u32 %v1018, 4294901760
    %1020 = vmatpush1.msra.mxu0 %v1019
    %1021 = vmatprep.subr.mxu0 0.0
    %v1022 = vand.u32 %v173, 4294901760
    %v1023 = vsub.f32 %v173, %v1022
    %v1024 = vand.u32 %v1023, 4294901760
    %v1025 = vsub.f32 %v1023, %v1024
    %v1026 = vand.u32 %v1025, 4294901760
    %1027 = vmatpush1.msra.mxu0 %v1026
    %1028 = vmatprep.subr.mxu0 0.0
    %v1029 = vand.u32 %v174, 4294901760
    %v1030 = vsub.f32 %v174, %v1029
    %v1031 = vand.u32 %v1030, 4294901760
    %v1032 = vsub.f32 %v1030, %v1031
    %v1033 = vand.u32 %v1032, 4294901760
    %1034 = vmatpush1.msra.mxu0 %v1033
    %1035 = vmatprep.subr.mxu0 0.0
    %v1036 = vand.u32 %v175, 4294901760
    %v1037 = vsub.f32 %v175, %v1036
    %v1038 = vand.u32 %v1037, 4294901760
    %v1039 = vsub.f32 %v1037, %v1038
    %v1040 = vand.u32 %v1039, 4294901760
    %1041 = vmatpush1.msra.mxu0 %v1040
    %1042 = vmatprep.subr.mxu0 0.0
    %v1043 = vand.u32 %v176, 4294901760
    %v1044 = vsub.f32 %v176, %v1043
    %v1045 = vand.u32 %v1044, 4294901760
    %v1046 = vsub.f32 %v1044, %v1045
    %v1047 = vand.u32 %v1046, 4294901760
    %1048 = vmatpush1.msra.mxu0 %v1047
    %1049 = vmatprep.subr.mxu0 0.0
    %v1050 = vand.u32 %v177, 4294901760
    %v1051 = vsub.f32 %v177, %v1050
    %v1052 = vand.u32 %v1051, 4294901760
    %v1053 = vsub.f32 %v1051, %v1052
    %v1054 = vand.u32 %v1053, 4294901760
    %1055 = vmatpush1.msra.mxu0 %v1054
    %1056 = vmatprep.subr.mxu0 0.0
    %v1057 = vand.u32 %v178, 4294901760
    %v1058 = vsub.f32 %v178, %v1057
    %v1059 = vand.u32 %v1058, 4294901760
    %v1060 = vsub.f32 %v1058, %v1059
    %v1061 = vand.u32 %v1060, 4294901760
    %1062 = vmatpush1.msra.mxu0 %v1061
    %1063 = vmatprep.subr.mxu0 0.0
    %v1064 = vand.u32 %v179, 4294901760
    %v1065 = vsub.f32 %v179, %v1064
    %v1066 = vand.u32 %v1065, 4294901760
    %v1067 = vsub.f32 %v1065, %v1066
    %v1068 = vand.u32 %v1067, 4294901760
    %1069 = vmatpush1.msra.mxu0 %v1068
    %1070 = vmatprep.subr.mxu0 0.0
    %1071 = vmatpush1.msra.mxu0 0.0
    %1072 = vmatprep.subr.mxu0 0.0
    %1073 = vmatpush1.msra.mxu0 0.0
    %1074 = vmatprep.subr.mxu0 0.0
    %1075 = vmatpush1.msra.mxu0 0.0
    %1076 = vmatprep.subr.mxu0 0.0
    %1077 = vmatpush1.msra.mxu0 0.0
    %1078 = vmatprep.subr.mxu0 0.0
    %1079 = vmatpush1.msra.mxu0 0.0
    %1080 = vmatprep.subr.mxu0 0.0
    %1081 = vmatpush1.msra.mxu0 0.0
    %1082 = vmatprep.subr.mxu0 0.0
    %1083 = vmatpush1.msra.mxu0 0.0
    %1084 = vmatprep.subr.mxu0 0.0
    %1085 = vmatpush1.msra.mxu0 0.0
    %1086 = vmatprep.subr.mxu0 0.0
    %1087 = vmatpush1.msra.mxu0 0.0
    %1088 = vmatprep.subr.mxu0 0.0
    %1089 = vmatpush1.msra.mxu0 0.0
    %1090 = vmatprep.subr.mxu0 0.0
    %1091 = vmatpush1.msra.mxu0 0.0
    %1092 = vmatprep.subr.mxu0 0.0
    %1093 = vmatpush1.msra.mxu0 0.0
    %1094 = vmatprep.subr.mxu0 0.0
    %1095 = vmatpush1.msra.mxu0 0.0
    %1096 = vmatprep.subr.mxu0 0.0
    %1097 = vmatpush1.msra.mxu0 0.0
    %1098 = vmatprep.subr.mxu0 0.0
    %1099 = vmatpush1.msra.mxu0 0.0
    %1100 = vmatprep.subr.mxu0 0.0
    %1101 = vmatpush1.msra.mxu0 0.0
    %1102 = vmatprep.subr.mxu0 0.0
    %1103 = vmatpush1.msra.mxu0 0.0
    %1104 = vmatprep.subr.mxu0 0.0
    %1105 = vmatpush1.msra.mxu0 0.0
    %1106 = vmatprep.subr.mxu0 0.0
    %1107 = vmatpush1.msra.mxu0 0.0
    %1108 = vmatprep.subr.mxu0 0.0
    %1109 = vmatpush1.msra.mxu0 0.0
    %1110 = vmatprep.subr.mxu0 0.0
    %1111 = vmatpush1.msra.mxu0 0.0
    %1112 = vmatprep.subr.mxu0 0.0
    %1113 = vmatpush1.msra.mxu0 0.0
    %1114 = vmatprep.subr.mxu0 0.0
    %1115 = vmatpush1.msra.mxu0 0.0
    %1116 = vmatprep.subr.mxu0 0.0
    %1117 = vmatpush1.msra.mxu0 0.0
    %1118 = vmatprep.mubr.f32.mxu0 0.0
    %v1119 = vand.u32 %v929, 4294901760
    %1120 = vmatmul.mubr.f32.gmra.mrb[0].mxu0 %v1119
    %v1121 = vpop.f32.mrb[0].mxu0
    %v1122 = vadd.f32 %v1011, %v1121
    %v1123 = vpop.f32.mrb[0].mxu0
    %1124 = vdwg.mxu0
    %1125 = vmatprep.subr.mxu0 0.0
    %v1126 = vand.u32 %v172, 4294901760
    %v1127 = vsub.f32 %v172, %v1126
    %1128 = vmatpush1.msra.mxu0 %v1127
    %1129 = vmatprep.subr.mxu0 0.0
    %v1130 = vand.u32 %v173, 4294901760
    %v1131 = vsub.f32 %v173, %v1130
    %1132 = vmatpush1.msra.mxu0 %v1131
    %1133 = vmatprep.subr.mxu0 0.0
    %v1134 = vand.u32 %v174, 4294901760
    %v1135 = vsub.f32 %v174, %v1134
    %1136 = vmatpush1.msra.mxu0 %v1135
    %1137 = vmatprep.subr.mxu0 0.0
    %v1138 = vand.u32 %v175, 4294901760
    %v1139 = vsub.f32 %v175, %v1138
    %1140 = vmatpush1.msra.mxu0 %v1139
    %1141 = vmatprep.subr.mxu0 0.0
    %v1142 = vand.u32 %v176, 4294901760
    %v1143 = vsub.f32 %v176, %v1142
    %1144 = vmatpush1.msra.mxu0 %v1143
    %1145 = vmatprep.subr.mxu0 0.0
    %v1146 = vand.u32 %v177, 4294901760
    %v1147 = vsub.f32 %v177, %v1146
    %1148 = vmatpush1.msra.mxu0 %v1147
    %1149 = vmatprep.subr.mxu0 0.0
    %v1150 = vand.u32 %v178, 4294901760
    %v1151 = vsub.f32 %v178, %v1150
    %1152 = vmatpush1.msra.mxu0 %v1151
    %1153 = vmatprep.subr.mxu0 0.0
    %v1154 = vand.u32 %v179, 4294901760
    %v1155 = vsub.f32 %v179, %v1154
    %1156 = vmatpush1.msra.mxu0 %v1155
    %1157 = vmatprep.subr.mxu0 0.0
    %1158 = vmatpush1.msra.mxu0 0.0
    %1159 = vmatprep.subr.mxu0 0.0
    %1160 = vmatpush1.msra.mxu0 0.0
    %1161 = vmatprep.subr.mxu0 0.0
    %1162 = vmatpush1.msra.mxu0 0.0
    %1163 = vmatprep.subr.mxu0 0.0
    %1164 = vmatpush1.msra.mxu0 0.0
    %1165 = vmatprep.subr.mxu0 0.0
    %1166 = vmatpush1.msra.mxu0 0.0
    %1167 = vmatprep.subr.mxu0 0.0
    %1168 = vmatpush1.msra.mxu0 0.0
    %1169 = vmatprep.subr.mxu0 0.0
    %1170 = vmatpush1.msra.mxu0 0.0
    %1171 = vmatprep.subr.mxu0 0.0
    %1172 = vmatpush1.msra.mxu0 0.0
    %1173 = vmatprep.subr.mxu0 0.0
    %1174 = vmatpush1.msra.mxu0 0.0
    %1175 = vmatprep.subr.mxu0 0.0
    %1176 = vmatpush1.msra.mxu0 0.0
    %1177 = vmatprep.subr.mxu0 0.0
    %1178 = vmatpush1.msra.mxu0 0.0
    %1179 = vmatprep.subr.mxu0 0.0
    %1180 = vmatpush1.msra.mxu0 0.0
    %1181 = vmatprep.subr.mxu0 0.0
    %1182 = vmatpush1.msra.mxu0 0.0
    %1183 = vmatprep.subr.mxu0 0.0
    %1184 = vmatpush1.msra.mxu0 0.0
    %1185 = vmatprep.subr.mxu0 0.0
    %1186 = vmatpush1.msra.mxu0 0.0
    %1187 = vmatprep.subr.mxu0 0.0
    %1188 = vmatpush1.msra.mxu0 0.0
    %1189 = vmatprep.subr.mxu0 0.0
    %1190 = vmatpush1.msra.mxu0 0.0
    %1191 = vmatprep.subr.mxu0 0.0
    %1192 = vmatpush1.msra.mxu0 0.0
    %1193 = vmatprep.subr.mxu0 0.0
    %1194 = vmatpush1.msra.mxu0 0.0
    %1195 = vmatprep.subr.mxu0 0.0
    %1196 = vmatpush1.msra.mxu0 0.0
    %1197 = vmatprep.subr.mxu0 0.0
    %1198 = vmatpush1.msra.mxu0 0.0
    %1199 = vmatprep.subr.mxu0 0.0
    %1200 = vmatpush1.msra.mxu0 0.0
    %1201 = vmatprep.subr.mxu0 0.0
    %1202 = vmatpush1.msra.mxu0 0.0
    %1203 = vmatprep.subr.mxu0 0.0
    %1204 = vmatpush1.msra.mxu0 0.0
    %1205 = vmatprep.mubr.f32.mxu0 0.0
    %v1206 = vand.u32 %v929, 4294901760
    %v1207 = vsub.f32 %v929, %v1206
    %1208 = vmatmul.mubr.f32.gmra.mrb[0].mxu0 %v1207
    %v1209 = vpop.f32.mrb[0].mxu0
    %v1210 = vadd.f32 %v1122, %v1209
    %v1211 = vpop.f32.mrb[0].mxu0
    %1212 = vdwg.mxu0
    %1213 = vmatprep.subr.mxu0 0.0
    %v1214 = vand.u32 %v172, 4294901760
    %1215 = vmatpush1.msra.mxu0 %v1214
    %1216 = vmatprep.subr.mxu0 0.0
    %v1217 = vand.u32 %v173, 4294901760
    %1218 = vmatpush1.msra.mxu0 %v1217
    %1219 = vmatprep.subr.mxu0 0.0
    %v1220 = vand.u32 %v174, 4294901760
    %1221 = vmatpush1.msra.mxu0 %v1220
    %1222 = vmatprep.subr.mxu0 0.0
    %v1223 = vand.u32 %v175, 4294901760
    %1224 = vmatpush1.msra.mxu0 %v1223
    %1225 = vmatprep.subr.mxu0 0.0
    %v1226 = vand.u32 %v176, 4294901760
    %1227 = vmatpush1.msra.mxu0 %v1226
    %1228 = vmatprep.subr.mxu0 0.0
    %v1229 = vand.u32 %v177, 4294901760
    %1230 = vmatpush1.msra.mxu0 %v1229
    %1231 = vmatprep.subr.mxu0 0.0
    %v1232 = vand.u32 %v178, 4294901760
    %1233 = vmatpush1.msra.mxu0 %v1232
    %1234 = vmatprep.subr.mxu0 0.0
    %v1235 = vand.u32 %v179, 4294901760
    %1236 = vmatpush1.msra.mxu0 %v1235
    %1237 = vmatprep.subr.mxu0 0.0
    %1238 = vmatpush1.msra.mxu0 0.0
    %1239 = vmatprep.subr.mxu0 0.0
    %1240 = vmatpush1.msra.mxu0 0.0
    %1241 = vmatprep.subr.mxu0 0.0
    %1242 = vmatpush1.msra.mxu0 0.0
    %1243 = vmatprep.subr.mxu0 0.0
    %1244 = vmatpush1.msra.mxu0 0.0
    %1245 = vmatprep.subr.mxu0 0.0
    %1246 = vmatpush1.msra.mxu0 0.0
    %1247 = vmatprep.subr.mxu0 0.0
    %1248 = vmatpush1.msra.mxu0 0.0
    %1249 = vmatprep.subr.mxu0 0.0
    %1250 = vmatpush1.msra.mxu0 0.0
    %1251 = vmatprep.subr.mxu0 0.0
    %1252 = vmatpush1.msra.mxu0 0.0
    %1253 = vmatprep.subr.mxu0 0.0
    %1254 = vmatpush1.msra.mxu0 0.0
    %1255 = vmatprep.subr.mxu0 0.0
    %1256 = vmatpush1.msra.mxu0 0.0
    %1257 = vmatprep.subr.mxu0 0.0
    %1258 = vmatpush1.msra.mxu0 0.0
    %1259 = vmatprep.subr.mxu0 0.0
    %1260 = vmatpush1.msra.mxu0 0.0
    %1261 = vmatprep.subr.mxu0 0.0
    %1262 = vmatpush1.msra.mxu0 0.0
    %1263 = vmatprep.subr.mxu0 0.0
    %1264 = vmatpush1.msra.mxu0 0.0
    %1265 = vmatprep.subr.mxu0 0.0
    %1266 = vmatpush1.msra.mxu0 0.0
    %1267 = vmatprep.subr.mxu0 0.0
    %1268 = vmatpush1.msra.mxu0 0.0
    %1269 = vmatprep.subr.mxu0 0.0
    %1270 = vmatpush1.msra.mxu0 0.0
    %1271 = vmatprep.subr.mxu0 0.0
    %1272 = vmatpush1.msra.mxu0 0.0
    %1273 = vmatprep.subr.mxu0 0.0
    %1274 = vmatpush1.msra.mxu0 0.0
    %1275 = vmatprep.subr.mxu0 0.0
    %1276 = vmatpush1.msra.mxu0 0.0
    %1277 = vmatprep.subr.mxu0 0.0
    %1278 = vmatpush1.msra.mxu0 0.0
    %1279 = vmatprep.subr.mxu0 0.0
    %1280 = vmatpush1.msra.mxu0 0.0
    %1281 = vmatprep.subr.mxu0 0.0
    %1282 = vmatpush1.msra.mxu0 0.0
    %1283 = vmatprep.subr.mxu0 0.0
    %1284 = vmatpush1.msra.mxu0 0.0
    %1285 = vmatprep.mubr.f32.mxu0 0.0
    %v1286 = vand.u32 %v929, 4294901760
    %v1287 = vsub.f32 %v929, %v1286
    %v1288 = vand.u32 %v1287, 4294901760
    %1289 = vmatmul.mubr.f32.gmra.mrb[0].mxu0 %v1288
    %v1290 = vpop.f32.mrb[0].mxu0
    %v1291 = vadd.f32 %v1210, %v1290
    %v1292 = vpop.f32.mrb[0].mxu0
    %1293 = vdwg.mxu0
    %1294 = vmatprep.subr.mxu0 0.0
    %v1295 = vand.u32 %v172, 4294901760
    %v1296 = vsub.f32 %v172, %v1295
    %v1297 = vand.u32 %v1296, 4294901760
    %1298 = vmatpush1.msra.mxu0 %v1297
    %1299 = vmatprep.subr.mxu0 0.0
    %v1300 = vand.u32 %v173, 4294901760
    %v1301 = vsub.f32 %v173, %v1300
    %v1302 = vand.u32 %v1301, 4294901760
    %1303 = vmatpush1.msra.mxu0 %v1302
    %1304 = vmatprep.subr.mxu0 0.0
    %v1305 = vand.u32 %v174, 4294901760
    %v1306 = vsub.f32 %v174, %v1305
    %v1307 = vand.u32 %v1306, 4294901760
    %1308 = vmatpush1.msra.mxu0 %v1307
    %1309 = vmatprep.subr.mxu0 0.0
    %v1310 = vand.u32 %v175, 4294901760
    %v1311 = vsub.f32 %v175, %v1310
    %v1312 = vand.u32 %v1311, 4294901760
    %1313 = vmatpush1.msra.mxu0 %v1312
    %1314 = vmatprep.subr.mxu0 0.0
    %v1315 = vand.u32 %v176, 4294901760
    %v1316 = vsub.f32 %v176, %v1315
    %v1317 = vand.u32 %v1316, 4294901760
    %1318 = vmatpush1.msra.mxu0 %v1317
    %1319 = vmatprep.subr.mxu0 0.0
    %v1320 = vand.u32 %v177, 4294901760
    %v1321 = vsub.f32 %v177, %v1320
    %v1322 = vand.u32 %v1321, 4294901760
    %1323 = vmatpush1.msra.mxu0 %v1322
    %1324 = vmatprep.subr.mxu0 0.0
    %v1325 = vand.u32 %v178, 4294901760
    %v1326 = vsub.f32 %v178, %v1325
    %v1327 = vand.u32 %v1326, 4294901760
    %1328 = vmatpush1.msra.mxu0 %v1327
    %1329 = vmatprep.subr.mxu0 0.0
    %v1330 = vand.u32 %v179, 4294901760
    %v1331 = vsub.f32 %v179, %v1330
    %v1332 = vand.u32 %v1331, 4294901760
    %1333 = vmatpush1.msra.mxu0 %v1332
    %1334 = vmatprep.subr.mxu0 0.0
    %1335 = vmatpush1.msra.mxu0 0.0
    %1336 = vmatprep.subr.mxu0 0.0
    %1337 = vmatpush1.msra.mxu0 0.0
    %1338 = vmatprep.subr.mxu0 0.0
    %1339 = vmatpush1.msra.mxu0 0.0
    %1340 = vmatprep.subr.mxu0 0.0
    %1341 = vmatpush1.msra.mxu0 0.0
    %1342 = vmatprep.subr.mxu0 0.0
    %1343 = vmatpush1.msra.mxu0 0.0
    %1344 = vmatprep.subr.mxu0 0.0
    %1345 = vmatpush1.msra.mxu0 0.0
    %1346 = vmatprep.subr.mxu0 0.0
    %1347 = vmatpush1.msra.mxu0 0.0
    %1348 = vmatprep.subr.mxu0 0.0
    %1349 = vmatpush1.msra.mxu0 0.0
    %1350 = vmatprep.subr.mxu0 0.0
    %1351 = vmatpush1.msra.mxu0 0.0
    %1352 = vmatprep.subr.mxu0 0.0
    %1353 = vmatpush1.msra.mxu0 0.0
    %1354 = vmatprep.subr.mxu0 0.0
    %1355 = vmatpush1.msra.mxu0 0.0
    %1356 = vmatprep.subr.mxu0 0.0
    %1357 = vmatpush1.msra.mxu0 0.0
    %1358 = vmatprep.subr.mxu0 0.0
    %1359 = vmatpush1.msra.mxu0 0.0
    %1360 = vmatprep.subr.mxu0 0.0
    %1361 = vmatpush1.msra.mxu0 0.0
    %1362 = vmatprep.subr.mxu0 0.0
    %1363 = vmatpush1.msra.mxu0 0.0
    %1364 = vmatprep.subr.mxu0 0.0
    %1365 = vmatpush1.msra.mxu0 0.0
    %1366 = vmatprep.subr.mxu0 0.0
    %1367 = vmatpush1.msra.mxu0 0.0
    %1368 = vmatprep.subr.mxu0 0.0
    %1369 = vmatpush1.msra.mxu0 0.0
    %1370 = vmatprep.subr.mxu0 0.0
    %1371 = vmatpush1.msra.mxu0 0.0
    %1372 = vmatprep.subr.mxu0 0.0
    %1373 = vmatpush1.msra.mxu0 0.0
    %1374 = vmatprep.subr.mxu0 0.0
    %1375 = vmatpush1.msra.mxu0 0.0
    %1376 = vmatprep.subr.mxu0 0.0
    %1377 = vmatpush1.msra.mxu0 0.0
    %1378 = vmatprep.subr.mxu0 0.0
    %1379 = vmatpush1.msra.mxu0 0.0
    %1380 = vmatprep.subr.mxu0 0.0
    %1381 = vmatpush1.msra.mxu0 0.0
    %1382 = vmatprep.mubr.f32.mxu0 0.0
    %v1383 = vand.u32 %v929, 4294901760
    %1384 = vmatmul.mubr.f32.gmra.mrb[0].mxu0 %v1383
    %v1385 = vpop.f32.mrb[0].mxu0
    %v1386 = vadd.f32 %v1291, %v1385
    %v1387 = vpop.f32.mrb[0].mxu0
    %1388 = vdwg.mxu0
    %1389 = vmatprep.subr.mxu0 0.0
    %v1390 = vand.u32 %v172, 4294901760
    %1391 = vmatpush1.msra.mxu0 %v1390
    %1392 = vmatprep.subr.mxu0 0.0
    %v1393 = vand.u32 %v173, 4294901760
    %1394 = vmatpush1.msra.mxu0 %v1393
    %1395 = vmatprep.subr.mxu0 0.0
    %v1396 = vand.u32 %v174, 4294901760
    %1397 = vmatpush1.msra.mxu0 %v1396
    %1398 = vmatprep.subr.mxu0 0.0
    %v1399 = vand.u32 %v175, 4294901760
    %1400 = vmatpush1.msra.mxu0 %v1399
    %1401 = vmatprep.subr.mxu0 0.0
    %v1402 = vand.u32 %v176, 4294901760
    %1403 = vmatpush1.msra.mxu0 %v1402
    %1404 = vmatprep.subr.mxu0 0.0
    %v1405 = vand.u32 %v177, 4294901760
    %1406 = vmatpush1.msra.mxu0 %v1405
    %1407 = vmatprep.subr.mxu0 0.0
    %v1408 = vand.u32 %v178, 4294901760
    %1409 = vmatpush1.msra.mxu0 %v1408
    %1410 = vmatprep.subr.mxu0 0.0
    %v1411 = vand.u32 %v179, 4294901760
    %1412 = vmatpush1.msra.mxu0 %v1411
    %1413 = vmatprep.subr.mxu0 0.0
    %1414 = vmatpush1.msra.mxu0 0.0
    %1415 = vmatprep.subr.mxu0 0.0
    %1416 = vmatpush1.msra.mxu0 0.0
    %1417 = vmatprep.subr.mxu0 0.0
    %1418 = vmatpush1.msra.mxu0 0.0
    %1419 = vmatprep.subr.mxu0 0.0
    %1420 = vmatpush1.msra.mxu0 0.0
    %1421 = vmatprep.subr.mxu0 0.0
    %1422 = vmatpush1.msra.mxu0 0.0
    %1423 = vmatprep.subr.mxu0 0.0
    %1424 = vmatpush1.msra.mxu0 0.0
    %1425 = vmatprep.subr.mxu0 0.0
    %1426 = vmatpush1.msra.mxu0 0.0
    %1427 = vmatprep.subr.mxu0 0.0
    %1428 = vmatpush1.msra.mxu0 0.0
    %1429 = vmatprep.subr.mxu0 0.0
    %1430 = vmatpush1.msra.mxu0 0.0
    %1431 = vmatprep.subr.mxu0 0.0
    %1432 = vmatpush1.msra.mxu0 0.0
    %1433 = vmatprep.subr.mxu0 0.0
    %1434 = vmatpush1.msra.mxu0 0.0
    %1435 = vmatprep.subr.mxu0 0.0
    %1436 = vmatpush1.msra.mxu0 0.0
    %1437 = vmatprep.subr.mxu0 0.0
    %1438 = vmatpush1.msra.mxu0 0.0
    %1439 = vmatprep.subr.mxu0 0.0
    %1440 = vmatpush1.msra.mxu0 0.0
    %1441 = vmatprep.subr.mxu0 0.0
    %1442 = vmatpush1.msra.mxu0 0.0
    %1443 = vmatprep.subr.mxu0 0.0
    %1444 = vmatpush1.msra.mxu0 0.0
    %1445 = vmatprep.subr.mxu0 0.0
    %1446 = vmatpush1.msra.mxu0 0.0
    %1447 = vmatprep.subr.mxu0 0.0
    %1448 = vmatpush1.msra.mxu0 0.0
    %1449 = vmatprep.subr.mxu0 0.0
    %1450 = vmatpush1.msra.mxu0 0.0
    %1451 = vmatprep.subr.mxu0 0.0
    %1452 = vmatpush1.msra.mxu0 0.0
    %1453 = vmatprep.subr.mxu0 0.0
    %1454 = vmatpush1.msra.mxu0 0.0
    %1455 = vmatprep.subr.mxu0 0.0
    %1456 = vmatpush1.msra.mxu0 0.0
    %1457 = vmatprep.subr.mxu0 0.0
    %1458 = vmatpush1.msra.mxu0 0.0
    %1459 = vmatprep.subr.mxu0 0.0
    %1460 = vmatpush1.msra.mxu0 0.0
    %1461 = vmatprep.mubr.f32.mxu0 0.0
    %v1462 = vand.u32 %v929, 4294901760
    %1463 = vmatmul.mubr.f32.gmra.mrb[0].mxu0 %v1462
    %v1464 = vpop.f32.mrb[0].mxu0
    %v1465 = vadd.f32 %v1386, %v1464
    %v1466 = vpop.f32.mrb[0].mxu0
    %1467 = vdwg.mxu0
    %v1468 = vmax.f32 %v1465, 0.0
    %v1469 = vadd.f32 %v833, %v1468
    %vm1470 = vcmask 31744
    %v1472 = vsel %vm1470, %v1469, 0
    %vm1474 = vcmask 1043456
    %v1476 = vsel %vm1474, %v180, 0
    %1478 = vmatprep.subr.mxu0 0.0
    %v1479 = vand.u32 %v1476, 4294901760
    %1480 = vmatpush1.msra.mxu0 %v1479
    %1481 = vmatprep.subr.mxu0 0.0
    %1482 = vmatpush1.msra.mxu0 0.0
    %1483 = vmatprep.subr.mxu0 0.0
    %1484 = vmatpush1.msra.mxu0 0.0
    %1485 = vmatprep.subr.mxu0 0.0
    %1486 = vmatpush1.msra.mxu0 0.0
    %1487 = vmatprep.subr.mxu0 0.0
    %1488 = vmatpush1.msra.mxu0 0.0
    %1489 = vmatprep.subr.mxu0 0.0
    %1490 = vmatpush1.msra.mxu0 0.0
    %1491 = vmatprep.subr.mxu0 0.0
    %1492 = vmatpush1.msra.mxu0 0.0
    %1493 = vmatprep.subr.mxu0 0.0
    %1494 = vmatpush1.msra.mxu0 0.0
    %1495 = vmatprep.subr.mxu0 0.0
    %1496 = vmatpush1.msra.mxu0 0.0
    %1497 = vmatprep.subr.mxu0 0.0
    %1498 = vmatpush1.msra.mxu0 0.0
    %1499 = vmatprep.subr.mxu0 0.0
    %1500 = vmatpush1.msra.mxu0 0.0
    %1501 = vmatprep.subr.mxu0 0.0
    %1502 = vmatpush1.msra.mxu0 0.0
    %1503 = vmatprep.subr.mxu0 0.0
    %1504 = vmatpush1.msra.mxu0 0.0
    %1505 = vmatprep.subr.mxu0 0.0
    %1506 = vmatpush1.msra.mxu0 0.0
    %1507 = vmatprep.subr.mxu0 0.0
    %1508 = vmatpush1.msra.mxu0 0.0
    %1509 = vmatprep.subr.mxu0 0.0
    %1510 = vmatpush1.msra.mxu0 0.0
    %1511 = vmatprep.subr.mxu0 0.0
    %1512 = vmatpush1.msra.mxu0 0.0
    %1513 = vmatprep.subr.mxu0 0.0
    %1514 = vmatpush1.msra.mxu0 0.0
    %1515 = vmatprep.subr.mxu0 0.0
    %1516 = vmatpush1.msra.mxu0 0.0
    %1517 = vmatprep.subr.mxu0 0.0
    %1518 = vmatpush1.msra.mxu0 0.0
    %1519 = vmatprep.subr.mxu0 0.0
    %1520 = vmatpush1.msra.mxu0 0.0
    %1521 = vmatprep.subr.mxu0 0.0
    %1522 = vmatpush1.msra.mxu0 0.0
    %1523 = vmatprep.subr.mxu0 0.0
    %1524 = vmatpush1.msra.mxu0 0.0
    %1525 = vmatprep.subr.mxu0 0.0
    %1526 = vmatpush1.msra.mxu0 0.0
    %1527 = vmatprep.subr.mxu0 0.0
    %1528 = vmatpush1.msra.mxu0 0.0
    %1529 = vmatprep.subr.mxu0 0.0
    %1530 = vmatpush1.msra.mxu0 0.0
    %1531 = vmatprep.subr.mxu0 0.0
    %1532 = vmatpush1.msra.mxu0 0.0
    %1533 = vmatprep.subr.mxu0 0.0
    %1534 = vmatpush1.msra.mxu0 0.0
    %1535 = vmatprep.subr.mxu0 0.0
    %1536 = vmatpush1.msra.mxu0 0.0
    %1537 = vmatprep.subr.mxu0 0.0
    %1538 = vmatpush1.msra.mxu0 0.0
    %1539 = vmatprep.subr.mxu0 0.0
    %1540 = vmatpush1.msra.mxu0 0.0
    %1541 = vmatprep.subr.mxu0 0.0
    %1542 = vmatpush1.msra.mxu0 0.0
    %1543 = vmatprep.mubr.f32.mxu0 0.0
    %v1544 = vand.u32 %v1472, 4294901760
    %v1545 = vsub.f32 %v1472, %v1544
    %v1546 = vand.u32 %v1545, 4294901760
    %v1547 = vsub.f32 %v1545, %v1546
    %v1548 = vand.u32 %v1547, 4294901760
    %1549 = vmatmul.mubr.f32.gmra.mrb[0].mxu0 %v1548
    %v1550 = vpop.f32.mrb[0].mxu0
    %v1551 = vadd.f32 0.0, %v1550
    %v1552 = vpop.f32.mrb[0].mxu0
    %1553 = vdwg.mxu0
    %1554 = vmatprep.subr.mxu0 0.0
    %v1555 = vand.u32 %v1476, 4294901760
    %v1556 = vsub.f32 %v1476, %v1555
    %v1557 = vand.u32 %v1556, 4294901760
    %v1558 = vsub.f32 %v1556, %v1557
    %v1559 = vand.u32 %v1558, 4294901760
    %1560 = vmatpush1.msra.mxu0 %v1559
    %1561 = vmatprep.subr.mxu0 0.0
    %1562 = vmatpush1.msra.mxu0 0.0
    %1563 = vmatprep.subr.mxu0 0.0
    %1564 = vmatpush1.msra.mxu0 0.0
    %1565 = vmatprep.subr.mxu0 0.0
    %1566 = vmatpush1.msra.mxu0 0.0
    %1567 = vmatprep.subr.mxu0 0.0
    %1568 = vmatpush1.msra.mxu0 0.0
    %1569 = vmatprep.subr.mxu0 0.0
    %1570 = vmatpush1.msra.mxu0 0.0
    %1571 = vmatprep.subr.mxu0 0.0
    %1572 = vmatpush1.msra.mxu0 0.0
    %1573 = vmatprep.subr.mxu0 0.0
    %1574 = vmatpush1.msra.mxu0 0.0
    %1575 = vmatprep.subr.mxu0 0.0
    %1576 = vmatpush1.msra.mxu0 0.0
    %1577 = vmatprep.subr.mxu0 0.0
    %1578 = vmatpush1.msra.mxu0 0.0
    %1579 = vmatprep.subr.mxu0 0.0
    %1580 = vmatpush1.msra.mxu0 0.0
    %1581 = vmatprep.subr.mxu0 0.0
    %1582 = vmatpush1.msra.mxu0 0.0
    %1583 = vmatprep.subr.mxu0 0.0
    %1584 = vmatpush1.msra.mxu0 0.0
    %1585 = vmatprep.subr.mxu0 0.0
    %1586 = vmatpush1.msra.mxu0 0.0
    %1587 = vmatprep.subr.mxu0 0.0
    %1588 = vmatpush1.msra.mxu0 0.0
    %1589 = vmatprep.subr.mxu0 0.0
    %1590 = vmatpush1.msra.mxu0 0.0
    %1591 = vmatprep.subr.mxu0 0.0
    %1592 = vmatpush1.msra.mxu0 0.0
    %1593 = vmatprep.subr.mxu0 0.0
    %1594 = vmatpush1.msra.mxu0 0.0
    %1595 = vmatprep.subr.mxu0 0.0
    %1596 = vmatpush1.msra.mxu0 0.0
    %1597 = vmatprep.subr.mxu0 0.0
    %1598 = vmatpush1.msra.mxu0 0.0
    %1599 = vmatprep.subr.mxu0 0.0
    %1600 = vmatpush1.msra.mxu0 0.0
    %1601 = vmatprep.subr.mxu0 0.0
    %1602 = vmatpush1.msra.mxu0 0.0
    %1603 = vmatprep.subr.mxu0 0.0
    %1604 = vmatpush1.msra.mxu0 0.0
    %1605 = vmatprep.subr.mxu0 0.0
    %1606 = vmatpush1.msra.mxu0 0.0
    %1607 = vmatprep.subr.mxu0 0.0
    %1608 = vmatpush1.msra.mxu0 0.0
    %1609 = vmatprep.subr.mxu0 0.0
    %1610 = vmatpush1.msra.mxu0 0.0
    %1611 = vmatprep.subr.mxu0 0.0
    %1612 = vmatpush1.msra.mxu0 0.0
    %1613 = vmatprep.subr.mxu0 0.0
    %1614 = vmatpush1.msra.mxu0 0.0
    %1615 = vmatprep.subr.mxu0 0.0
    %1616 = vmatpush1.msra.mxu0 0.0
    %1617 = vmatprep.subr.mxu0 0.0
    %1618 = vmatpush1.msra.mxu0 0.0
    %1619 = vmatprep.subr.mxu0 0.0
    %1620 = vmatpush1.msra.mxu0 0.0
    %1621 = vmatprep.subr.mxu0 0.0
    %1622 = vmatpush1.msra.mxu0 0.0
    %1623 = vmatprep.mubr.f32.mxu0 0.0
    %v1624 = vand.u32 %v1472, 4294901760
    %1625 = vmatmul.mubr.f32.gmra.mrb[0].mxu0 %v1624
    %v1626 = vpop.f32.mrb[0].mxu0
    %v1627 = vadd.f32 %v1551, %v1626
    %v1628 = vpop.f32.mrb[0].mxu0
    %1629 = vdwg.mxu0
    %1630 = vmatprep.subr.mxu0 0.0
    %v1631 = vand.u32 %v1476, 4294901760
    %v1632 = vsub.f32 %v1476, %v1631
    %1633 = vmatpush1.msra.mxu0 %v1632
    %1634 = vmatprep.subr.mxu0 0.0
    %1635 = vmatpush1.msra.mxu0 0.0
    %1636 = vmatprep.subr.mxu0 0.0
    %1637 = vmatpush1.msra.mxu0 0.0
    %1638 = vmatprep.subr.mxu0 0.0
    %1639 = vmatpush1.msra.mxu0 0.0
    %1640 = vmatprep.subr.mxu0 0.0
    %1641 = vmatpush1.msra.mxu0 0.0
    %1642 = vmatprep.subr.mxu0 0.0
    %1643 = vmatpush1.msra.mxu0 0.0
    %1644 = vmatprep.subr.mxu0 0.0
    %1645 = vmatpush1.msra.mxu0 0.0
    %1646 = vmatprep.subr.mxu0 0.0
    %1647 = vmatpush1.msra.mxu0 0.0
    %1648 = vmatprep.subr.mxu0 0.0
    %1649 = vmatpush1.msra.mxu0 0.0
    %1650 = vmatprep.subr.mxu0 0.0
    %1651 = vmatpush1.msra.mxu0 0.0
    %1652 = vmatprep.subr.mxu0 0.0
    %1653 = vmatpush1.msra.mxu0 0.0
    %1654 = vmatprep.subr.mxu0 0.0
    %1655 = vmatpush1.msra.mxu0 0.0
    %1656 = vmatprep.subr.mxu0 0.0
    %1657 = vmatpush1.msra.mxu0 0.0
    %1658 = vmatprep.subr.mxu0 0.0
    %1659 = vmatpush1.msra.mxu0 0.0
    %1660 = vmatprep.subr.mxu0 0.0
    %1661 = vmatpush1.msra.mxu0 0.0
    %1662 = vmatprep.subr.mxu0 0.0
    %1663 = vmatpush1.msra.mxu0 0.0
    %1664 = vmatprep.subr.mxu0 0.0
    %1665 = vmatpush1.msra.mxu0 0.0
    %1666 = vmatprep.subr.mxu0 0.0
    %1667 = vmatpush1.msra.mxu0 0.0
    %1668 = vmatprep.subr.mxu0 0.0
    %1669 = vmatpush1.msra.mxu0 0.0
    %1670 = vmatprep.subr.mxu0 0.0
    %1671 = vmatpush1.msra.mxu0 0.0
    %1672 = vmatprep.subr.mxu0 0.0
    %1673 = vmatpush1.msra.mxu0 0.0
    %1674 = vmatprep.subr.mxu0 0.0
    %1675 = vmatpush1.msra.mxu0 0.0
    %1676 = vmatprep.subr.mxu0 0.0
    %1677 = vmatpush1.msra.mxu0 0.0
    %1678 = vmatprep.subr.mxu0 0.0
    %1679 = vmatpush1.msra.mxu0 0.0
    %1680 = vmatprep.subr.mxu0 0.0
    %1681 = vmatpush1.msra.mxu0 0.0
    %1682 = vmatprep.subr.mxu0 0.0
    %1683 = vmatpush1.msra.mxu0 0.0
    %1684 = vmatprep.subr.mxu0 0.0
    %1685 = vmatpush1.msra.mxu0 0.0
    %1686 = vmatprep.subr.mxu0 0.0
    %1687 = vmatpush1.msra.mxu0 0.0
    %1688 = vmatprep.subr.mxu0 0.0
    %1689 = vmatpush1.msra.mxu0 0.0
    %1690 = vmatprep.subr.mxu0 0.0
    %1691 = vmatpush1.msra.mxu0 0.0
    %1692 = vmatprep.subr.mxu0 0.0
    %1693 = vmatpush1.msra.mxu0 0.0
    %1694 = vmatprep.subr.mxu0 0.0
    %1695 = vmatpush1.msra.mxu0 0.0
    %1696 = vmatprep.mubr.f32.mxu0 0.0
    %v1697 = vand.u32 %v1472, 4294901760
    %v1698 = vsub.f32 %v1472, %v1697
    %1699 = vmatmul.mubr.f32.gmra.mrb[0].mxu0 %v1698
    %v1700 = vpop.f32.mrb[0].mxu0
    %v1701 = vadd.f32 %v1627, %v1700
    %v1702 = vpop.f32.mrb[0].mxu0
    %1703 = vdwg.mxu0
    %1704 = vmatprep.subr.mxu0 0.0
    %v1705 = vand.u32 %v1476, 4294901760
    %1706 = vmatpush1.msra.mxu0 %v1705
    %1707 = vmatprep.subr.mxu0 0.0
    %1708 = vmatpush1.msra.mxu0 0.0
    %1709 = vmatprep.subr.mxu0 0.0
    %1710 = vmatpush1.msra.mxu0 0.0
    %1711 = vmatprep.subr.mxu0 0.0
    %1712 = vmatpush1.msra.mxu0 0.0
    %1713 = vmatprep.subr.mxu0 0.0
    %1714 = vmatpush1.msra.mxu0 0.0
    %1715 = vmatprep.subr.mxu0 0.0
    %1716 = vmatpush1.msra.mxu0 0.0
    %1717 = vmatprep.subr.mxu0 0.0
    %1718 = vmatpush1.msra.mxu0 0.0
    %1719 = vmatprep.subr.mxu0 0.0
    %1720 = vmatpush1.msra.mxu0 0.0
    %1721 = vmatprep.subr.mxu0 0.0
    %1722 = vmatpush1.msra.mxu0 0.0
    %1723 = vmatprep.subr.mxu0 0.0
    %1724 = vmatpush1.msra.mxu0 0.0
    %1725 = vmatprep.subr.mxu0 0.0
    %1726 = vmatpush1.msra.mxu0 0.0
    %1727 = vmatprep.subr.mxu0 0.0
    %1728 = vmatpush1.msra.mxu0 0.0
    %1729 = vmatprep.subr.mxu0 0.0
    %1730 = vmatpush1.msra.mxu0 0.0
    %1731 = vmatprep.subr.mxu0 0.0
    %1732 = vmatpush1.msra.mxu0 0.0
    %1733 = vmatprep.subr.mxu0 0.0
    %1734 = vmatpush1.msra.mxu0 0.0
    %1735 = vmatprep.subr.mxu0 0.0
    %1736 = vmatpush1.msra.mxu0 0.0
    %1737 = vmatprep.subr.mxu0 0.0
    %1738 = vmatpush1.msra.mxu0 0.0
    %1739 = vmatprep.subr.mxu0 0.0
    %1740 = vmatpush1.msra.mxu0 0.0
    %1741 = vmatprep.subr.mxu0 0.0
    %1742 = vmatpush1.msra.mxu0 0.0
    %1743 = vmatprep.subr.mxu0 0.0
    %1744 = vmatpush1.msra.mxu0 0.0
    %1745 = vmatprep.subr.mxu0 0.0
    %1746 = vmatpush1.msra.mxu0 0.0
    %1747 = vmatprep.subr.mxu0 0.0
    %1748 = vmatpush1.msra.mxu0 0.0
    %1749 = vmatprep.subr.mxu0 0.0
    %1750 = vmatpush1.msra.mxu0 0.0
    %1751 = vmatprep.subr.mxu0 0.0
    %1752 = vmatpush1.msra.mxu0 0.0
    %1753 = vmatprep.subr.mxu0 0.0
    %1754 = vmatpush1.msra.mxu0 0.0
    %1755 = vmatprep.subr.mxu0 0.0
    %1756 = vmatpush1.msra.mxu0 0.0
    %1757 = vmatprep.subr.mxu0 0.0
    %1758 = vmatpush1.msra.mxu0 0.0
    %1759 = vmatprep.subr.mxu0 0.0
    %1760 = vmatpush1.msra.mxu0 0.0
    %1761 = vmatprep.subr.mxu0 0.0
    %1762 = vmatpush1.msra.mxu0 0.0
    %1763 = vmatprep.subr.mxu0 0.0
    %1764 = vmatpush1.msra.mxu0 0.0
    %1765 = vmatprep.subr.mxu0 0.0
    %1766 = vmatpush1.msra.mxu0 0.0
    %1767 = vmatprep.subr.mxu0 0.0
    %1768 = vmatpush1.msra.mxu0 0.0
    %1769 = vmatprep.mubr.f32.mxu0 0.0
    %v1770 = vand.u32 %v1472, 4294901760
    %v1771 = vsub.f32 %v1472, %v1770
    %v1772 = vand.u32 %v1771, 4294901760
    %1773 = vmatmul.mubr.f32.gmra.mrb[0].mxu0 %v1772
    %v1774 = vpop.f32.mrb[0].mxu0
    %v1775 = vadd.f32 %v1701, %v1774
    %v1776 = vpop.f32.mrb[0].mxu0
    %1777 = vdwg.mxu0
    %1778 = vmatprep.subr.mxu0 0.0
    %v1779 = vand.u32 %v1476, 4294901760
    %v1780 = vsub.f32 %v1476, %v1779
    %v1781 = vand.u32 %v1780, 4294901760
    %1782 = vmatpush1.msra.mxu0 %v1781
    %1783 = vmatprep.subr.mxu0 0.0
    %1784 = vmatpush1.msra.mxu0 0.0
    %1785 = vmatprep.subr.mxu0 0.0
    %1786 = vmatpush1.msra.mxu0 0.0
    %1787 = vmatprep.subr.mxu0 0.0
    %1788 = vmatpush1.msra.mxu0 0.0
    %1789 = vmatprep.subr.mxu0 0.0
    %1790 = vmatpush1.msra.mxu0 0.0
    %1791 = vmatprep.subr.mxu0 0.0
    %1792 = vmatpush1.msra.mxu0 0.0
    %1793 = vmatprep.subr.mxu0 0.0
    %1794 = vmatpush1.msra.mxu0 0.0
    %1795 = vmatprep.subr.mxu0 0.0
    %1796 = vmatpush1.msra.mxu0 0.0
    %1797 = vmatprep.subr.mxu0 0.0
    %1798 = vmatpush1.msra.mxu0 0.0
    %1799 = vmatprep.subr.mxu0 0.0
    %1800 = vmatpush1.msra.mxu0 0.0
    %1801 = vmatprep.subr.mxu0 0.0
    %1802 = vmatpush1.msra.mxu0 0.0
    %1803 = vmatprep.subr.mxu0 0.0
    %1804 = vmatpush1.msra.mxu0 0.0
    %1805 = vmatprep.subr.mxu0 0.0
    %1806 = vmatpush1.msra.mxu0 0.0
    %1807 = vmatprep.subr.mxu0 0.0
    %1808 = vmatpush1.msra.mxu0 0.0
    %1809 = vmatprep.subr.mxu0 0.0
    %1810 = vmatpush1.msra.mxu0 0.0
    %1811 = vmatprep.subr.mxu0 0.0
    %1812 = vmatpush1.msra.mxu0 0.0
    %1813 = vmatprep.subr.mxu0 0.0
    %1814 = vmatpush1.msra.mxu0 0.0
    %1815 = vmatprep.subr.mxu0 0.0
    %1816 = vmatpush1.msra.mxu0 0.0
    %1817 = vmatprep.subr.mxu0 0.0
    %1818 = vmatpush1.msra.mxu0 0.0
    %1819 = vmatprep.subr.mxu0 0.0
    %1820 = vmatpush1.msra.mxu0 0.0
    %1821 = vmatprep.subr.mxu0 0.0
    %1822 = vmatpush1.msra.mxu0 0.0
    %1823 = vmatprep.subr.mxu0 0.0
    %1824 = vmatpush1.msra.mxu0 0.0
    %1825 = vmatprep.subr.mxu0 0.0
    %1826 = vmatpush1.msra.mxu0 0.0
    %1827 = vmatprep.subr.mxu0 0.0
    %1828 = vmatpush1.msra.mxu0 0.0
    %1829 = vmatprep.subr.mxu0 0.0
    %1830 = vmatpush1.msra.mxu0 0.0
    %1831 = vmatprep.subr.mxu0 0.0
    %1832 = vmatpush1.msra.mxu0 0.0
    %1833 = vmatprep.subr.mxu0 0.0
    %1834 = vmatpush1.msra.mxu0 0.0
    %1835 = vmatprep.subr.mxu0 0.0
    %1836 = vmatpush1.msra.mxu0 0.0
    %1837 = vmatprep.subr.mxu0 0.0
    %1838 = vmatpush1.msra.mxu0 0.0
    %1839 = vmatprep.subr.mxu0 0.0
    %1840 = vmatpush1.msra.mxu0 0.0
    %1841 = vmatprep.subr.mxu0 0.0
    %1842 = vmatpush1.msra.mxu0 0.0
    %1843 = vmatprep.subr.mxu0 0.0
    %1844 = vmatpush1.msra.mxu0 0.0
    %1845 = vmatprep.mubr.f32.mxu0 0.0
    %v1846 = vand.u32 %v1472, 4294901760
    %1847 = vmatmul.mubr.f32.gmra.mrb[0].mxu0 %v1846
    %v1848 = vpop.f32.mrb[0].mxu0
    %v1849 = vadd.f32 %v1775, %v1848
    %v1850 = vpop.f32.mrb[0].mxu0
    %1851 = vdwg.mxu0
    %1852 = vmatprep.subr.mxu0 0.0
    %v1853 = vand.u32 %v1476, 4294901760
    %1854 = vmatpush1.msra.mxu0 %v1853
    %1855 = vmatprep.subr.mxu0 0.0
    %1856 = vmatpush1.msra.mxu0 0.0
    %1857 = vmatprep.subr.mxu0 0.0
    %1858 = vmatpush1.msra.mxu0 0.0
    %1859 = vmatprep.subr.mxu0 0.0
    %1860 = vmatpush1.msra.mxu0 0.0
    %1861 = vmatprep.subr.mxu0 0.0
    %1862 = vmatpush1.msra.mxu0 0.0
    %1863 = vmatprep.subr.mxu0 0.0
    %1864 = vmatpush1.msra.mxu0 0.0
    %1865 = vmatprep.subr.mxu0 0.0
    %1866 = vmatpush1.msra.mxu0 0.0
    %1867 = vmatprep.subr.mxu0 0.0
    %1868 = vmatpush1.msra.mxu0 0.0
    %1869 = vmatprep.subr.mxu0 0.0
    %1870 = vmatpush1.msra.mxu0 0.0
    %1871 = vmatprep.subr.mxu0 0.0
    %1872 = vmatpush1.msra.mxu0 0.0
    %1873 = vmatprep.subr.mxu0 0.0
    %1874 = vmatpush1.msra.mxu0 0.0
    %1875 = vmatprep.subr.mxu0 0.0
    %1876 = vmatpush1.msra.mxu0 0.0
    %1877 = vmatprep.subr.mxu0 0.0
    %1878 = vmatpush1.msra.mxu0 0.0
    %1879 = vmatprep.subr.mxu0 0.0
    %1880 = vmatpush1.msra.mxu0 0.0
    %1881 = vmatprep.subr.mxu0 0.0
    %1882 = vmatpush1.msra.mxu0 0.0
    %1883 = vmatprep.subr.mxu0 0.0
    %1884 = vmatpush1.msra.mxu0 0.0
    %1885 = vmatprep.subr.mxu0 0.0
    %1886 = vmatpush1.msra.mxu0 0.0
    %1887 = vmatprep.subr.mxu0 0.0
    %1888 = vmatpush1.msra.mxu0 0.0
    %1889 = vmatprep.subr.mxu0 0.0
    %1890 = vmatpush1.msra.mxu0 0.0
    %1891 = vmatprep.subr.mxu0 0.0
    %1892 = vmatpush1.msra.mxu0 0.0
    %1893 = vmatprep.subr.mxu0 0.0
    %1894 = vmatpush1.msra.mxu0 0.0
    %1895 = vmatprep.subr.mxu0 0.0
    %1896 = vmatpush1.msra.mxu0 0.0
    %1897 = vmatprep.subr.mxu0 0.0
    %1898 = vmatpush1.msra.mxu0 0.0
    %1899 = vmatprep.subr.mxu0 0.0
    %1900 = vmatpush1.msra.mxu0 0.0
    %1901 = vmatprep.subr.mxu0 0.0
    %1902 = vmatpush1.msra.mxu0 0.0
    %1903 = vmatprep.subr.mxu0 0.0
    %1904 = vmatpush1.msra.mxu0 0.0
    %1905 = vmatprep.subr.mxu0 0.0
    %1906 = vmatpush1.msra.mxu0 0.0
    %1907 = vmatprep.subr.mxu0 0.0
    %1908 = vmatpush1.msra.mxu0 0.0
    %1909 = vmatprep.subr.mxu0 0.0
    %1910 = vmatpush1.msra.mxu0 0.0
    %1911 = vmatprep.subr.mxu0 0.0
    %1912 = vmatpush1.msra.mxu0 0.0
    %1913 = vmatprep.subr.mxu0 0.0
    %1914 = vmatpush1.msra.mxu0 0.0
    %1915 = vmatprep.subr.mxu0 0.0
    %1916 = vmatpush1.msra.mxu0 0.0
    %1917 = vmatprep.mubr.f32.mxu0 0.0
    %v1918 = vand.u32 %v1472, 4294901760
    %1919 = vmatmul.mubr.f32.gmra.mrb[0].mxu0 %v1918
    %v1920 = vpop.f32.mrb[0].mxu0
    %v1921 = vadd.f32 %v1849, %v1920
    %v1922 = vpop.f32.mrb[0].mxu0
    %1923 = vdwg.mxu0
    %v1924 = vsub.f32 0.0, %v1921
    %v1925 = vmul.f32 %v1924, 1.442695
    %v1926 = vpow.pop %v1925
    %v1927 = vadd.f32 %v1926, 1.0
    %v1928 = vrcp.pop %v1927
    %v1929 = vmul.f32 1.0, %v1928
    %v1930 = vlaneseq
    %v1931 = vshrl.u32 %v1930, 7
    %v1932 = vsub.s32 0, %v1931
    %v1933 = vrot.slane %v1929, %v1932
    %1935 = vbcast.lane.b32.xlu0 %v1933, 256
    %v1936 = vpop.permute.xlu0 %1935
    %s1938 = sor.u32 256, 8
    %1939 = vbcast.lane.b32.xlu0 %v1933, %s1938
    %v1940 = vpop.permute.xlu0 %1939
    %s1942 = sor.u32 256, 16
    %1943 = vbcast.lane.b32.xlu0 %v1933, %s1942
    %v1944 = vpop.permute.xlu0 %1943
    %s1946 = sor.u32 256, 24
    %1947 = vbcast.lane.b32.xlu0 %v1933, %s1946
    %v1948 = vpop.permute.xlu0 %1947
    %s1950 = sor.u32 256, 32
    %1951 = vbcast.lane.b32.xlu0 %v1933, %s1950
    %v1952 = vpop.permute.xlu0 %1951
    %s1954 = sor.u32 256, 40
    %1955 = vbcast.lane.b32.xlu0 %v1933, %s1954
    %v1956 = vpop.permute.xlu0 %1955
    %s1958 = sor.u32 256, 48
    %1959 = vbcast.lane.b32.xlu0 %v1933, %s1958
    %v1960 = vpop.permute.xlu0 %1959
    %s1962 = sor.u32 256, 56
    %1963 = vbcast.lane.b32.xlu0 %v1933, %s1962
    %v1964 = vpop.permute.xlu0 %1963
    %v1965 = vlaneseq
    %v1966 = vshrl.u32 %v1965, 7
    %v1967 = vsub.s32 1, %v1966
    %v1968 = vrot.slane %v1929, %v1967
    %1970 = vbcast.lane.b32.xlu0 %v1968, 256
    %v1971 = vpop.permute.xlu0 %1970
    %s1973 = sor.u32 256, 8
    %1974 = vbcast.lane.b32.xlu0 %v1968, %s1973
    %v1975 = vpop.permute.xlu0 %1974
    %s1977 = sor.u32 256, 16
    %1978 = vbcast.lane.b32.xlu0 %v1968, %s1977
    %v1979 = vpop.permute.xlu0 %1978
    %s1981 = sor.u32 256, 24
    %1982 = vbcast.lane.b32.xlu0 %v1968, %s1981
    %v1983 = vpop.permute.xlu0 %1982
    %s1985 = sor.u32 256, 32
    %1986 = vbcast.lane.b32.xlu0 %v1968, %s1985
    %v1987 = vpop.permute.xlu0 %1986
    %s1989 = sor.u32 256, 40
    %1990 = vbcast.lane.b32.xlu0 %v1968, %s1989
    %v1991 = vpop.permute.xlu0 %1990
    %s1993 = sor.u32 256, 48
    %1994 = vbcast.lane.b32.xlu0 %v1968, %s1993
    %v1995 = vpop.permute.xlu0 %1994
    %s1997 = sor.u32 256, 56
    %1998 = vbcast.lane.b32.xlu0 %v1968, %s1997
    %v1999 = vpop.permute.xlu0 %1998
    %vm2000 = vcmask 7168
    %2001 = vst.msk [vmem:[%s3] sm:$0xff] %vm2000, %v1936
    %2002 = vst.msk [vmem:[%s3 + $0x8] sm:$0xff] %vm2000, %v1940
    %2003 = vst.msk [vmem:[%s3 + $0x10] sm:$0xff] %vm2000, %v1944
    %2004 = vst.msk [vmem:[%s3 + $0x18] sm:$0xff] %vm2000, %v1948
    %2005 = vst.msk [vmem:[%s3 + $0x20] sm:$0xff] %vm2000, %v1952
    %2006 = vst.msk [vmem:[%s3 + $0x28] sm:$0xff] %vm2000, %v1956
    %2007 = vst.msk [vmem:[%s3 + $0x30] sm:$0xff] %vm2000, %v1960
    %2008 = vst.msk [vmem:[%s3 + $0x38] sm:$0xff] %vm2000, %v1964
    %2009 = vst.msk [vmem:[%s3 + $0x40] sm:$0xff] %vm2000, %v1971
    %2010 = vst.msk [vmem:[%s3 + $0x48] sm:$0xff] %vm2000, %v1975
    %2011 = vst.msk [vmem:[%s3 + $0x50] sm:$0xff] %vm2000, %v1979
    %2012 = vst.msk [vmem:[%s3 + $0x58] sm:$0xff] %vm2000, %v1983
    %2013 = vst.msk [vmem:[%s3 + $0x60] sm:$0xff] %vm2000, %v1987
    %2014 = vst.msk [vmem:[%s3 + $0x68] sm:$0xff] %vm2000, %v1991
    %2015 = vst.msk [vmem:[%s3 + $0x70] sm:$0xff] %vm2000, %v1995
    %2016 = vst.msk [vmem:[%s3 + $0x78] sm:$0xff] %vm2000, %v1999
    // Predicated region
    $region18: #{tpu_custom_call.1} parent=1 // pred_check
      _
    $region19: #{tpu_custom_call.1} parent=1 // pred_check_branch
      %2018 = sbr.rel (0) target = $region21
    $region20: #{tpu_custom_call.1} parent=1 // pred_region
      _
    $region21: #{tpu_custom_call.1} parent=1 // pred_fallthru
      _
    // Predicated region
    $region22: #{tpu_custom_call.1} parent=1 // pred_check
      _
    $region23: #{tpu_custom_call.1} parent=1 // pred_check_branch
      %2020 = sbr.rel (0) target = $region25
    $region24: #{tpu_custom_call.1} parent=1 // pred_region
      _
    $region25: #{tpu_custom_call.1} parent=1 // pred_fallthru
      _
    %2021 = vsyncpa [#allocation3], 1

</llo_original>
